<compile_context>
chip_gen: v5e
topology: v5e:2x2
jax: 0.10.0
libtpu: 0.0.40
codegen_flags: <defaults>
</compile_context>

<pallas_src>
import functools

import jax
import jax.numpy as jnp
from jax.experimental import pallas as pl
from jax.experimental.pallas import tpu as pltpu


def _round_up(x, m):
    return ((x + m - 1) // m) * m


# ----------------------------------------------------------------------------
# Kernel: one batch tile through the whole folded encoder/decoder/confidence chain.
# refs layout: [x_ref, w_0 .. w_{L-1}, vec_slab_ref, out_ref, conf_ref]
# ----------------------------------------------------------------------------
def _autoencoder_kernel(acts, widths, in_dim, *refs):
    n_layers = len(acts)
    x_ref = refs[0]
    w_refs = refs[1:1 + n_layers]
    vec_ref = refs[1 + n_layers]          # (n_layers + 2, slab_w) f32: biases / conf row / conf bias
    out_ref, conf_ref = refs[-2], refs[-1]

    h = x_ref[...].astype(jnp.float32)

    for li in range(n_layers):
        w = w_refs[li][...]                                  # (fin, fout) in compute dtype (bf16/f32)
        b = vec_ref[li:li + 1, 0:widths[li]]                 # (1, fout) f32
        h = jnp.dot(h.astype(w.dtype), w,
                    preferred_element_type=jnp.float32) + b  # MXU matmul, f32 accumulate
        act = acts[li]
        if act == "relu":
            h = jnp.maximum(h, 0.0)
        elif act == "tanh":
            h = jnp.tanh(h)
        # "none": plain Linear (encoder bottleneck -> 8)

    out_ref[...] = h.astype(out_ref.dtype)

    # confidence = Linear(in_dim, 1): done as a VPU lane reduction (avoid N=1 MXU pass)
    wc = vec_ref[n_layers:n_layers + 1, 0:in_dim]            # (1, in_dim)
    bc = vec_ref[n_layers + 1:n_layers + 2, 0:1]             # (1, 1)
    conf = jnp.sum(h * wc, axis=-1, keepdims=True) + bc
    conf_ref[...] = conf.astype(conf_ref.dtype)


# ----------------------------------------------------------------------------
# Wrapper: batch grid, explicit BlockSpecs, resident weights, parallel batch axis.
# ----------------------------------------------------------------------------
def autoencoder_forward(x, weights, bias_slab, acts, widths, *, block_b=256):
    B, in_dim = x.shape
    n_layers = len(weights)

    # Batch tile: multiple of 8 sublanes; >=256 recommended in production for MXU fill.
    tile_b = min(block_b, _round_up(B, 8))
    tile_b = _round_up(tile_b, 8)
    padded_b = _round_up(B, tile_b)
    if padded_b != B:
        x = jnp.pad(x, ((0, padded_b - B), (0, 0)))
    grid = (padded_b // tile_b,)

    kernel = functools.partial(_autoencoder_kernel, acts, widths, in_dim)

    in_specs = [pl.BlockSpec((tile_b, in_dim), lambda i: (i, 0))]
    # Weight / slab blocks: full-array blocks with constant index_map -> DMA'd once, stay resident.
    in_specs += [pl.BlockSpec(w.shape, lambda i: (0, 0)) for w in weights]
    in_specs += [pl.BlockSpec(bias_slab.shape, lambda i: (0, 0))]

    out_specs = (
        pl.BlockSpec((tile_b, in_dim), lambda i: (i, 0)),
        pl.BlockSpec((tile_b, 1), lambda i: (i, 0)),
    )

    out, conf = pl.pallas_call(
        kernel,
        grid=grid,
        in_specs=in_specs,
        out_specs=out_specs,
        out_shape=(
            jax.ShapeDtypeStruct((padded_b, in_dim), jnp.float32),
            jax.ShapeDtypeStruct((padded_b, 1), jnp.float32),
        ),
        compiler_params=pltpu.CompilerParams(
            # batch axis is embarrassingly parallel -> use both TCs on v7x (no-op on v5e/v6e)
            dimension_semantics=("parallel",),
        ),
    )(x, *weights, bias_slab)

    return out[:B], conf[:B]


# ----------------------------------------------------------------------------
# Deterministic parameter construction (shapes match the nn.Module __init__).
# ----------------------------------------------------------------------------
def _init_linear(key, fin, fout):
    k1, k2 = jax.random.split(key)
    bound = 1.0 / jnp.sqrt(float(fin))
    w = jax.random.uniform(k1, (fin, fout), jnp.float32, -bound, bound)
    b = jax.random.uniform(k2, (1, fout), jnp.float32, -bound, bound)
    return w, b


def _init_bn_affine(key, feat, eps=1e-5):
    # eval-mode BatchNorm1d folded to (scale, shift) from (gamma, beta, mean, var, eps)
    k1, k2, k3, k4 = jax.random.split(key, 4)
    gamma = 1.0 + 0.1 * jax.random.normal(k1, (1, feat), jnp.float32)
    beta = 0.1 * jax.random.normal(k2, (1, feat), jnp.float32)
    mean = 0.1 * jax.random.normal(k3, (1, feat), jnp.float32)
    var = jax.random.uniform(k4, (1, feat), jnp.float32, 0.5, 1.5)
    scale = gamma / jnp.sqrt(var + eps)
    shift = beta - mean * scale
    return scale, shift


def build_raw_params(key, in_dim):
    enc_dims = [(in_dim, 512), (512, 256), (256, 128), (128, 64), (64, 32), (32, 8)]
    dec_dims = [(8, 32), (32, 64), (64, 128), (128, 256), (256, 512), (512, in_dim)]

    layers = []
    for i, (fin, fout) in enumerate(enc_dims):        # encoder: Linear -> BN -> ReLU (last: plain)
        key, kw, kb = jax.random.split(key, 3)
        w, b = _init_linear(kw, fin, fout)
        bn = _init_bn_affine(kb, fout) if i < len(enc_dims) - 1 else None
        layers.append({"w": w, "b": b, "bn": bn, "kind": "enc"})
    for i, (fin, fout) in enumerate(dec_dims):        # decoder: Linear -> ReLU -> BN (last: Tanh)
        key, kw, kb = jax.random.split(key, 3)
        w, b = _init_linear(kw, fin, fout)
        bn = _init_bn_affine(kb, fout) if i < len(dec_dims) - 1 else None
        layers.append({"w": w, "b": b, "bn": bn, "kind": "dec"})
    key, kc = jax.random.split(key)
    wc, bc = _init_linear(kc, in_dim, 1)              # confidence head
    return layers, (wc, bc)


# ----------------------------------------------------------------------------
# Glue: fold eval-mode BN into the Linear layers and pack params for the kernel.
#   encoder (Linear->BN->ReLU):   W' = W*scale,  b' = b*scale + shift           (same layer)
#   decoder (Linear->ReLU->BN):   scale/shift folded into the *next* Linear:
#                                 W2' = scale[:,None]*W2, b2' = shift@W2 + b2
# All per-feature vectors (biases, conf row, conf bias) packed into one f32 slab.
# ----------------------------------------------------------------------------
def fold_params(layers, conf, in_dim, compute_dtype=jnp.bfloat16):
    folded_w, folded_b, acts = [], [], []
    pending = None  # (scale, shift) from a previous decoder ReLU->BN block

    for layer in layers:
        w, b = layer["w"], layer["b"]
        if pending is not None:
            scale, shift = pending
            b = shift @ w + b
            w = scale.reshape(-1, 1) * w
            pending = None
        if layer["kind"] == "enc":
            if layer["bn"] is not None:
                scale, shift = layer["bn"]
                w = w * scale
                b = b * scale + shift
                acts.append("relu")
            else:
                acts.append("none")
        else:  # decoder
            if layer["bn"] is not None:
                acts.append("relu")
                pending = layer["bn"]
            else:
                acts.append("tanh")
        folded_w.append(w)
        folded_b.append(b)
    assert pending is None

    n_layers = len(folded_w)
    widths = tuple(int(w.shape[1]) for w in folded_w)
    slab_w = max(max(widths), in_dim, 1)

    slab = jnp.zeros((n_layers + 2, slab_w), jnp.float32)
    for i, b in enumerate(folded_b):
        slab = slab.at[i, :b.shape[1]].set(b[0])
    wc, bc = conf
    slab = slab.at[n_layers, :in_dim].set(wc[:, 0])
    slab = slab.at[n_layers + 1, 0].set(bc[0, 0])

    weights = [w.astype(compute_dtype) for w in folded_w]
    return weights, slab, tuple(acts), widths


# ----------------------------------------------------------------------------
# Pure-JAX reference of the ORIGINAL (unfolded) module for verification.
# ----------------------------------------------------------------------------
def reference_forward(x, layers, conf, matmul_dtype=None):
    def mm(h, w):
        if matmul_dtype is not None:
            h = h.astype(matmul_dtype)
            w = w.astype(matmul_dtype)
        return jnp.dot(h, w, preferred_element_type=jnp.float32)

    h = x
    for layer in layers:
        h = mm(h, layer["w"]) + layer["b"]
        if layer["kind"] == "enc":
            if layer["bn"] is not None:                 # Linear -> BN -> ReLU
                scale, shift = layer["bn"]
                h = jnp.maximum(h * scale + shift, 0.0)
            # else: bottleneck, plain Linear
        else:
            if layer["bn"] is not None:                 # Linear -> ReLU -> BN
                scale, shift = layer["bn"]
                h = jnp.maximum(h, 0.0) * scale + shift
            else:                                       # Linear -> Tanh
                h = jnp.tanh(h)
    wc, bc = conf
    return h, h @ wc + bc


if __name__ == "__main__":
    B, IN_DIM = 70, 16   # small smoke-test shapes; production should use batch tiles >= 256

    key = jax.random.PRNGKey(0)
    key, kx = jax.random.split(key)

    # "X_continously" — the continuous feature vector actually consumed by forward()
    x = jax.random.normal(kx, (B, IN_DIM), jnp.float32)
    # TODO(synk): X_discrete is unused by the reference forward() (embedding never called).

    layers, conf_params = build_raw_params(key, IN_DIM)

    # ---- f32 MXU path: tight check of folding + kernel structure -------------------
    ref_out, ref_conf = reference_forward(x, layers, conf_params)
    w32, slab32, acts, widths = fold_params(layers, conf_params, IN_DIM, jnp.float32)
    out32, conf32 = autoencoder_forward(x, w32, slab32, acts, widths, block_b=32)
    out32 = jax.block_until_ready(out32)
    conf32 = jax.block_until_ready(conf32)
    assert out32.shape == (B, IN_DIM) and conf32.shape == (B, 1)
    assert jnp.allclose(out32, ref_out, atol=5e-4, rtol=5e-4)
    assert jnp.allclose(conf32, ref_conf, atol=5e-4, rtol=5e-4)

    # ---- bf16 MXU path (production default): compare vs bf16-operand reference -----
    ref_out_bf, ref_conf_bf = reference_forward(x, layers, conf_params,
                                                matmul_dtype=jnp.bfloat16)
    wbf, slabbf, acts, widths = fold_params(layers, conf_params, IN_DIM, jnp.bfloat16)
    outbf, confbf = autoencoder_forward(x, wbf, slabbf, acts, widths, block_b=32)
    outbf = jax.block_until_ready(outbf)
    confbf = jax.block_until_ready(confbf)
    assert outbf.shape == (B, IN_DIM) and confbf.shape == (B, 1)
    assert jnp.allclose(outbf, ref_out_bf, atol=5e-2, rtol=5e-2)
    assert jnp.allclose(confbf, ref_conf_bf, atol=5e-2, rtol=5e-2)

    print("KERNEL_OK")
</pallas_src>

<mosaic_0001>
module attributes {stable_mosaic.version = 11 : i64} {
  func.func @_autoencoder_kernel(%arg0: i32, %arg1: memref<32x16xf32, #tpu.memory_space<vmem>>, %arg2: memref<16x512xf32, #tpu.memory_space<vmem>>, %arg3: memref<512x256xf32, #tpu.memory_space<vmem>>, %arg4: memref<256x128xf32, #tpu.memory_space<vmem>>, %arg5: memref<128x64xf32, #tpu.memory_space<vmem>>, %arg6: memref<64x32xf32, #tpu.memory_space<vmem>>, %arg7: memref<32x8xf32, #tpu.memory_space<vmem>>, %arg8: memref<8x32xf32, #tpu.memory_space<vmem>>, %arg9: memref<32x64xf32, #tpu.memory_space<vmem>>, %arg10: memref<64x128xf32, #tpu.memory_space<vmem>>, %arg11: memref<128x256xf32, #tpu.memory_space<vmem>>, %arg12: memref<256x512xf32, #tpu.memory_space<vmem>>, %arg13: memref<512x16xf32, #tpu.memory_space<vmem>>, %arg14: memref<14x512xf32, #tpu.memory_space<vmem>>, %arg15: memref<32x16xf32, #tpu.memory_space<vmem>>, %arg16: memref<32x1xf32, #tpu.memory_space<vmem>>) attributes {dimension_semantics = [#tpu.dimension_semantics<parallel>], iteration_bounds = array<i64: 3>, scalar_prefetch = 0 : i64, scratch_operands = 0 : i64, tpu.core_type = #tpu.core_type<tc>, window_params = [{transform_indices = @transform_0, window_bounds = array<i64: 32, 16>}, {pipeline_mode = #tpu.pipeline_mode<synchronous>, transform_indices = @transform_1, window_bounds = array<i64: 16, 512>}, {pipeline_mode = #tpu.pipeline_mode<synchronous>, transform_indices = @transform_2, window_bounds = array<i64: 512, 256>}, {pipeline_mode = #tpu.pipeline_mode<synchronous>, transform_indices = @transform_3, window_bounds = array<i64: 256, 128>}, {pipeline_mode = #tpu.pipeline_mode<synchronous>, transform_indices = @transform_4, window_bounds = array<i64: 128, 64>}, {pipeline_mode = #tpu.pipeline_mode<synchronous>, transform_indices = @transform_5, window_bounds = array<i64: 64, 32>}, {pipeline_mode = #tpu.pipeline_mode<synchronous>, transform_indices = @transform_6, window_bounds = array<i64: 32, 8>}, {pipeline_mode = #tpu.pipeline_mode<synchronous>, transform_indices = @transform_7, window_bounds = array<i64: 8, 32>}, {pipeline_mode = #tpu.pipeline_mode<synchronous>, transform_indices = @transform_8, window_bounds = array<i64: 32, 64>}, {pipeline_mode = #tpu.pipeline_mode<synchronous>, transform_indices = @transform_9, window_bounds = array<i64: 64, 128>}, {pipeline_mode = #tpu.pipeline_mode<synchronous>, transform_indices = @transform_10, window_bounds = array<i64: 128, 256>}, {pipeline_mode = #tpu.pipeline_mode<synchronous>, transform_indices = @transform_11, window_bounds = array<i64: 256, 512>}, {pipeline_mode = #tpu.pipeline_mode<synchronous>, transform_indices = @transform_12, window_bounds = array<i64: 512, 16>}, {pipeline_mode = #tpu.pipeline_mode<synchronous>, transform_indices = @transform_13, window_bounds = array<i64: 14, 512>}, {transform_indices = @transform_14, window_bounds = array<i64: 32, 16>}, {transform_indices = @transform_15, window_bounds = array<i64: 32, 1>}]} {
    %c0 = arith.constant 0 : index
    %c0_0 = arith.constant 0 : index
    %0 = vector.load %arg1[%c0, %c0_0] : memref<32x16xf32, #tpu.memory_space<vmem>>, vector<32x16xf32>
    %c0_1 = arith.constant 0 : index
    %c0_2 = arith.constant 0 : index
    %1 = vector.load %arg2[%c0_1, %c0_2] : memref<16x512xf32, #tpu.memory_space<vmem>>, vector<16x512xf32>
    %c0_3 = arith.constant 0 : index
    %c0_4 = arith.constant 0 : index
    %2 = vector.load %arg14[%c0_3, %c0_4] : memref<14x512xf32, #tpu.memory_space<vmem>>, vector<1x512xf32>
    %cst = arith.constant dense<0.000000e+00> : vector<32x512xf32>
    %3 = tpu.matmul %0, %1, %cst {dimension_numbers = #tpu.dot_dimension_numbers<[1], [0], [0], [1], [0, 0, 1, 1], [], []>} : vector<32x16xf32>, vector<16x512xf32>, vector<32x512xf32> -> vector<32x512xf32>
    %4 = vector.broadcast %2 : vector<1x512xf32> to vector<32x512xf32>
    %5 = arith.addf %3, %4 : vector<32x512xf32>
    %cst_5 = arith.constant 0.000000e+00 : f32
    %6 = vector.broadcast %cst_5 : f32 to vector<32x512xf32>
    %7 = arith.maximumf %5, %6 : vector<32x512xf32>
    %c0_6 = arith.constant 0 : index
    %c0_7 = arith.constant 0 : index
    %8 = vector.load %arg3[%c0_6, %c0_7] : memref<512x256xf32, #tpu.memory_space<vmem>>, vector<512x256xf32>
    %c1 = arith.constant 1 : index
    %c0_8 = arith.constant 0 : index
    %9 = vector.load %arg14[%c1, %c0_8] : memref<14x512xf32, #tpu.memory_space<vmem>>, vector<1x256xf32>
    %cst_9 = arith.constant dense<0.000000e+00> : vector<32x256xf32>
    %10 = tpu.matmul %7, %8, %cst_9 {dimension_numbers = #tpu.dot_dimension_numbers<[1], [0], [0], [1], [0, 0, 1, 1], [], []>} : vector<32x512xf32>, vector<512x256xf32>, vector<32x256xf32> -> vector<32x256xf32>
    %11 = vector.broadcast %9 : vector<1x256xf32> to vector<32x256xf32>
    %12 = arith.addf %10, %11 : vector<32x256xf32>
    %cst_10 = arith.constant 0.000000e+00 : f32
    %13 = vector.broadcast %cst_10 : f32 to vector<32x256xf32>
    %14 = arith.maximumf %12, %13 : vector<32x256xf32>
    %c0_11 = arith.constant 0 : index
    %c0_12 = arith.constant 0 : index
    %15 = vector.load %arg4[%c0_11, %c0_12] : memref<256x128xf32, #tpu.memory_space<vmem>>, vector<256x128xf32>
    %c2 = arith.constant 2 : index
    %c0_13 = arith.constant 0 : index
    %16 = vector.load %arg14[%c2, %c0_13] : memref<14x512xf32, #tpu.memory_space<vmem>>, vector<1x128xf32>
    %cst_14 = arith.constant dense<0.000000e+00> : vector<32x128xf32>
    %17 = tpu.matmul %14, %15, %cst_14 {dimension_numbers = #tpu.dot_dimension_numbers<[1], [0], [0], [1], [0, 0, 1, 1], [], []>} : vector<32x256xf32>, vector<256x128xf32>, vector<32x128xf32> -> vector<32x128xf32>
    %18 = vector.broadcast %16 : vector<1x128xf32> to vector<32x128xf32>
    %19 = arith.addf %17, %18 : vector<32x128xf32>
    %cst_15 = arith.constant 0.000000e+00 : f32
    %20 = vector.broadcast %cst_15 : f32 to vector<32x128xf32>
    %21 = arith.maximumf %19, %20 : vector<32x128xf32>
    %c0_16 = arith.constant 0 : index
    %c0_17 = arith.constant 0 : index
    %22 = vector.load %arg5[%c0_16, %c0_17] : memref<128x64xf32, #tpu.memory_space<vmem>>, vector<128x64xf32>
    %c3 = arith.constant 3 : index
    %c0_18 = arith.constant 0 : index
    %23 = vector.load %arg14[%c3, %c0_18] : memref<14x512xf32, #tpu.memory_space<vmem>>, vector<1x64xf32>
    %cst_19 = arith.constant dense<0.000000e+00> : vector<32x64xf32>
    %24 = tpu.matmul %21, %22, %cst_19 {dimension_numbers = #tpu.dot_dimension_numbers<[1], [0], [0], [1], [0, 0, 1, 1], [], []>} : vector<32x128xf32>, vector<128x64xf32>, vector<32x64xf32> -> vector<32x64xf32>
    %25 = vector.broadcast %23 : vector<1x64xf32> to vector<32x64xf32>
    %26 = arith.addf %24, %25 : vector<32x64xf32>
    %cst_20 = arith.constant 0.000000e+00 : f32
    %27 = vector.broadcast %cst_20 : f32 to vector<32x64xf32>
    %28 = arith.maximumf %26, %27 : vector<32x64xf32>
    %c0_21 = arith.constant 0 : index
    %c0_22 = arith.constant 0 : index
    %29 = vector.load %arg6[%c0_21, %c0_22] : memref<64x32xf32, #tpu.memory_space<vmem>>, vector<64x32xf32>
    %c4 = arith.constant 4 : index
    %c0_23 = arith.constant 0 : index
    %30 = vector.load %arg14[%c4, %c0_23] : memref<14x512xf32, #tpu.memory_space<vmem>>, vector<1x32xf32>
    %cst_24 = arith.constant dense<0.000000e+00> : vector<32x32xf32>
    %31 = tpu.matmul %28, %29, %cst_24 {dimension_numbers = #tpu.dot_dimension_numbers<[1], [0], [0], [1], [0, 0, 1, 1], [], []>} : vector<32x64xf32>, vector<64x32xf32>, vector<32x32xf32> -> vector<32x32xf32>
    %32 = vector.broadcast %30 : vector<1x32xf32> to vector<32x32xf32>
    %33 = arith.addf %31, %32 : vector<32x32xf32>
    %cst_25 = arith.constant 0.000000e+00 : f32
    %34 = vector.broadcast %cst_25 : f32 to vector<32x32xf32>
    %35 = arith.maximumf %33, %34 : vector<32x32xf32>
    %c0_26 = arith.constant 0 : index
    %c0_27 = arith.constant 0 : index
    %36 = vector.load %arg7[%c0_26, %c0_27] : memref<32x8xf32, #tpu.memory_space<vmem>>, vector<32x8xf32>
    %c5 = arith.constant 5 : index
    %c0_28 = arith.constant 0 : index
    %37 = vector.load %arg14[%c5, %c0_28] : memref<14x512xf32, #tpu.memory_space<vmem>>, vector<1x8xf32>
    %cst_29 = arith.constant dense<0.000000e+00> : vector<32x8xf32>
    %38 = tpu.matmul %35, %36, %cst_29 {dimension_numbers = #tpu.dot_dimension_numbers<[1], [0], [0], [1], [0, 0, 1, 1], [], []>} : vector<32x32xf32>, vector<32x8xf32>, vector<32x8xf32> -> vector<32x8xf32>
    %39 = vector.broadcast %37 : vector<1x8xf32> to vector<32x8xf32>
    %40 = arith.addf %38, %39 : vector<32x8xf32>
    %c0_30 = arith.constant 0 : index
    %c0_31 = arith.constant 0 : index
    %41 = vector.load %arg8[%c0_30, %c0_31] : memref<8x32xf32, #tpu.memory_space<vmem>>, vector<8x32xf32>
    %c6 = arith.constant 6 : index
    %c0_32 = arith.constant 0 : index
    %42 = vector.load %arg14[%c6, %c0_32] : memref<14x512xf32, #tpu.memory_space<vmem>>, vector<1x32xf32>
    %cst_33 = arith.constant dense<0.000000e+00> : vector<32x32xf32>
    %43 = tpu.matmul %40, %41, %cst_33 {dimension_numbers = #tpu.dot_dimension_numbers<[1], [0], [0], [1], [0, 0, 1, 1], [], []>} : vector<32x8xf32>, vector<8x32xf32>, vector<32x32xf32> -> vector<32x32xf32>
    %44 = vector.broadcast %42 : vector<1x32xf32> to vector<32x32xf32>
    %45 = arith.addf %43, %44 : vector<32x32xf32>
    %cst_34 = arith.constant 0.000000e+00 : f32
    %46 = vector.broadcast %cst_34 : f32 to vector<32x32xf32>
    %47 = arith.maximumf %45, %46 : vector<32x32xf32>
    %c0_35 = arith.constant 0 : index
    %c0_36 = arith.constant 0 : index
    %48 = vector.load %arg9[%c0_35, %c0_36] : memref<32x64xf32, #tpu.memory_space<vmem>>, vector<32x64xf32>
    %c7 = arith.constant 7 : index
    %c0_37 = arith.constant 0 : index
    %49 = vector.load %arg14[%c7, %c0_37] : memref<14x512xf32, #tpu.memory_space<vmem>>, vector<1x64xf32>
    %cst_38 = arith.constant dense<0.000000e+00> : vector<32x64xf32>
    %50 = tpu.matmul %47, %48, %cst_38 {dimension_numbers = #tpu.dot_dimension_numbers<[1], [0], [0], [1], [0, 0, 1, 1], [], []>} : vector<32x32xf32>, vector<32x64xf32>, vector<32x64xf32> -> vector<32x64xf32>
    %51 = vector.broadcast %49 : vector<1x64xf32> to vector<32x64xf32>
    %52 = arith.addf %50, %51 : vector<32x64xf32>
    %cst_39 = arith.constant 0.000000e+00 : f32
    %53 = vector.broadcast %cst_39 : f32 to vector<32x64xf32>
    %54 = arith.maximumf %52, %53 : vector<32x64xf32>
    %c0_40 = arith.constant 0 : index
    %c0_41 = arith.constant 0 : index
    %55 = vector.load %arg10[%c0_40, %c0_41] : memref<64x128xf32, #tpu.memory_space<vmem>>, vector<64x128xf32>
    %c8 = arith.constant 8 : index
    %c0_42 = arith.constant 0 : index
    %56 = vector.load %arg14[%c8, %c0_42] : memref<14x512xf32, #tpu.memory_space<vmem>>, vector<1x128xf32>
    %cst_43 = arith.constant dense<0.000000e+00> : vector<32x128xf32>
    %57 = tpu.matmul %54, %55, %cst_43 {dimension_numbers = #tpu.dot_dimension_numbers<[1], [0], [0], [1], [0, 0, 1, 1], [], []>} : vector<32x64xf32>, vector<64x128xf32>, vector<32x128xf32> -> vector<32x128xf32>
    %58 = vector.broadcast %56 : vector<1x128xf32> to vector<32x128xf32>
    %59 = arith.addf %57, %58 : vector<32x128xf32>
    %cst_44 = arith.constant 0.000000e+00 : f32
    %60 = vector.broadcast %cst_44 : f32 to vector<32x128xf32>
    %61 = arith.maximumf %59, %60 : vector<32x128xf32>
    %c0_45 = arith.constant 0 : index
    %c0_46 = arith.constant 0 : index
    %62 = vector.load %arg11[%c0_45, %c0_46] : memref<128x256xf32, #tpu.memory_space<vmem>>, vector<128x256xf32>
    %c9 = arith.constant 9 : index
    %c0_47 = arith.constant 0 : index
    %63 = vector.load %arg14[%c9, %c0_47] : memref<14x512xf32, #tpu.memory_space<vmem>>, vector<1x256xf32>
    %cst_48 = arith.constant dense<0.000000e+00> : vector<32x256xf32>
    %64 = tpu.matmul %61, %62, %cst_48 {dimension_numbers = #tpu.dot_dimension_numbers<[1], [0], [0], [1], [0, 0, 1, 1], [], []>} : vector<32x128xf32>, vector<128x256xf32>, vector<32x256xf32> -> vector<32x256xf32>
    %65 = vector.broadcast %63 : vector<1x256xf32> to vector<32x256xf32>
    %66 = arith.addf %64, %65 : vector<32x256xf32>
    %cst_49 = arith.constant 0.000000e+00 : f32
    %67 = vector.broadcast %cst_49 : f32 to vector<32x256xf32>
    %68 = arith.maximumf %66, %67 : vector<32x256xf32>
    %c0_50 = arith.constant 0 : index
    %c0_51 = arith.constant 0 : index
    %69 = vector.load %arg12[%c0_50, %c0_51] : memref<256x512xf32, #tpu.memory_space<vmem>>, vector<256x512xf32>
    %c10 = arith.constant 10 : index
    %c0_52 = arith.constant 0 : index
    %70 = vector.load %arg14[%c10, %c0_52] : memref<14x512xf32, #tpu.memory_space<vmem>>, vector<1x512xf32>
    %cst_53 = arith.constant dense<0.000000e+00> : vector<32x512xf32>
    %71 = tpu.matmul %68, %69, %cst_53 {dimension_numbers = #tpu.dot_dimension_numbers<[1], [0], [0], [1], [0, 0, 1, 1], [], []>} : vector<32x256xf32>, vector<256x512xf32>, vector<32x512xf32> -> vector<32x512xf32>
    %72 = vector.broadcast %70 : vector<1x512xf32> to vector<32x512xf32>
    %73 = arith.addf %71, %72 : vector<32x512xf32>
    %cst_54 = arith.constant 0.000000e+00 : f32
    %74 = vector.broadcast %cst_54 : f32 to vector<32x512xf32>
    %75 = arith.maximumf %73, %74 : vector<32x512xf32>
    %c0_55 = arith.constant 0 : index
    %c0_56 = arith.constant 0 : index
    %76 = vector.load %arg13[%c0_55, %c0_56] : memref<512x16xf32, #tpu.memory_space<vmem>>, vector<512x16xf32>
    %c11 = arith.constant 11 : index
    %c0_57 = arith.constant 0 : index
    %77 = vector.load %arg14[%c11, %c0_57] : memref<14x512xf32, #tpu.memory_space<vmem>>, vector<1x16xf32>
    %cst_58 = arith.constant dense<0.000000e+00> : vector<32x16xf32>
    %78 = tpu.matmul %75, %76, %cst_58 {dimension_numbers = #tpu.dot_dimension_numbers<[1], [0], [0], [1], [0, 0, 1, 1], [], []>} : vector<32x512xf32>, vector<512x16xf32>, vector<32x16xf32> -> vector<32x16xf32>
    %79 = vector.broadcast %77 : vector<1x16xf32> to vector<32x16xf32>
    %80 = arith.addf %78, %79 : vector<32x16xf32>
    %81 = math.tanh %80 : vector<32x16xf32>
    %c0_59 = arith.constant 0 : index
    %c0_60 = arith.constant 0 : index
    %82 = vector.load %arg15[%c0_59, %c0_60] : memref<32x16xf32, #tpu.memory_space<vmem>>, vector<32x16xf32>
    tpu.vector_store %arg15[%c0_59, %c0_60], %81 {strides = array<i32>} : memref<32x16xf32, #tpu.memory_space<vmem>>, vector<32x16xf32>,
    %c12 = arith.constant 12 : index
    %c0_61 = arith.constant 0 : index
    %83 = vector.load %arg14[%c12, %c0_61] : memref<14x512xf32, #tpu.memory_space<vmem>>, vector<1x16xf32>
    %c13 = arith.constant 13 : index
    %c0_62 = arith.constant 0 : index
    %84 = vector.load %arg14[%c13, %c0_62] : memref<14x512xf32, #tpu.memory_space<vmem>>, vector<1x1xf32>
    %85 = vector.broadcast %83 : vector<1x16xf32> to vector<32x16xf32>
    %86 = arith.mulf %81, %85 : vector<32x16xf32>
    %cst_63 = arith.constant dense<0.000000e+00> : vector<32xf32>
    %87 = vector.multi_reduction <add>, %86, %cst_63 [1] : vector<32x16xf32> to vector<32xf32>
    %88 = vector.shape_cast %87 : vector<32xf32> to vector<32x1xf32>
    %89 = vector.broadcast %84 : vector<1x1xf32> to vector<32x1xf32>
    %90 = arith.addf %88, %89 : vector<32x1xf32>
    %c0_64 = arith.constant 0 : index
    %c0_65 = arith.constant 0 : index
    %91 = vector.load %arg16[%c0_64, %c0_65] : memref<32x1xf32, #tpu.memory_space<vmem>>, vector<32x1xf32>
    tpu.vector_store %arg16[%c0_64, %c0_65], %90 {strides = array<i32>} : memref<32x1xf32, #tpu.memory_space<vmem>>, vector<32x1xf32>,
    return
  }
  func.func @transform_0(%arg0: i32) -> (i32, i32) {
    %c0_i32 = arith.constant 0 : i32
    %c0_i32_0 = arith.constant 0 : i32
    return %arg0, %c0_i32 : i32, i32
  }
  func.func @transform_1(%arg0: i32) -> (i32, i32) {
    %c0_i32 = arith.constant 0 : i32
    %c0_i32_0 = arith.constant 0 : i32
    %c0_i32_1 = arith.constant 0 : i32
    return %c0_i32, %c0_i32_0 : i32, i32
  }
  func.func @transform_2(%arg0: i32) -> (i32, i32) {
    %c0_i32 = arith.constant 0 : i32
    %c0_i32_0 = arith.constant 0 : i32
    %c0_i32_1 = arith.constant 0 : i32
    return %c0_i32, %c0_i32_0 : i32, i32
  }
  func.func @transform_3(%arg0: i32) -> (i32, i32) {
    %c0_i32 = arith.constant 0 : i32
    %c0_i32_0 = arith.constant 0 : i32
    %c0_i32_1 = arith.constant 0 : i32
    return %c0_i32, %c0_i32_0 : i32, i32
  }
  func.func @transform_4(%arg0: i32) -> (i32, i32) {
    %c0_i32 = arith.constant 0 : i32
    %c0_i32_0 = arith.constant 0 : i32
    %c0_i32_1 = arith.constant 0 : i32
    return %c0_i32, %c0_i32_0 : i32, i32
  }
  func.func @transform_5(%arg0: i32) -> (i32, i32) {
    %c0_i32 = arith.constant 0 : i32
    %c0_i32_0 = arith.constant 0 : i32
    %c0_i32_1 = arith.constant 0 : i32
    return %c0_i32, %c0_i32_0 : i32, i32
  }
  func.func @transform_6(%arg0: i32) -> (i32, i32) {
    %c0_i32 = arith.constant 0 : i32
    %c0_i32_0 = arith.constant 0 : i32
    %c0_i32_1 = arith.constant 0 : i32
    return %c0_i32, %c0_i32_0 : i32, i32
  }
  func.func @transform_7(%arg0: i32) -> (i32, i32) {
    %c0_i32 = arith.constant 0 : i32
    %c0_i32_0 = arith.constant 0 : i32
    %c0_i32_1 = arith.constant 0 : i32
    return %c0_i32, %c0_i32_0 : i32, i32
  }
  func.func @transform_8(%arg0: i32) -> (i32, i32) {
    %c0_i32 = arith.constant 0 : i32
    %c0_i32_0 = arith.constant 0 : i32
    %c0_i32_1 = arith.constant 0 : i32
    return %c0_i32, %c0_i32_0 : i32, i32
  }
  func.func @transform_9(%arg0: i32) -> (i32, i32) {
    %c0_i32 = arith.constant 0 : i32
    %c0_i32_0 = arith.constant 0 : i32
    %c0_i32_1 = arith.constant 0 : i32
    return %c0_i32, %c0_i32_0 : i32, i32
  }
  func.func @transform_10(%arg0: i32) -> (i32, i32) {
    %c0_i32 = arith.constant 0 : i32
    %c0_i32_0 = arith.constant 0 : i32
    %c0_i32_1 = arith.constant 0 : i32
    return %c0_i32, %c0_i32_0 : i32, i32
  }
  func.func @transform_11(%arg0: i32) -> (i32, i32) {
    %c0_i32 = arith.constant 0 : i32
    %c0_i32_0 = arith.constant 0 : i32
    %c0_i32_1 = arith.constant 0 : i32
    return %c0_i32, %c0_i32_0 : i32, i32
  }
  func.func @transform_12(%arg0: i32) -> (i32, i32) {
    %c0_i32 = arith.constant 0 : i32
    %c0_i32_0 = arith.constant 0 : i32
    %c0_i32_1 = arith.constant 0 : i32
    return %c0_i32, %c0_i32_0 : i32, i32
  }
  func.func @transform_13(%arg0: i32) -> (i32, i32) {
    %c0_i32 = arith.constant 0 : i32
    %c0_i32_0 = arith.constant 0 : i32
    %c0_i32_1 = arith.constant 0 : i32
    return %c0_i32, %c0_i32_0 : i32, i32
  }
  func.func @transform_14(%arg0: i32) -> (i32, i32) {
    %c0_i32 = arith.constant 0 : i32
    %c0_i32_0 = arith.constant 0 : i32
    return %arg0, %c0_i32 : i32, i32
  }
  func.func @transform_15(%arg0: i32) -> (i32, i32) {
    %c0_i32 = arith.constant 0 : i32
    %c0_i32_0 = arith.constant 0 : i32
    return %arg0, %c0_i32 : i32, i32
  }
}

</mosaic_0001>

<llo_original>
// kernel: tpu_custom_call.1
$region0: #{tpu_custom_call.1}
  #allocation0 [shape = 'u32[]', space=smem, size = 0x4, offset = 0x4, fixed_abs, tag = 'smem constant byte address 0x4 - core index']
  #allocation1 [shape = 'u32[72,128]{1,0:T(1,128)}', space=vmem, size = 0x9000, scoped, tag = 'internal scratch']
  %s0 = inlined_call_operand.vmem [shape: f32[96,16], index: 0, kind: input, shape index: {}]
  %s1 = inlined_call_operand.vmem [shape: f32[16,512], index: 1, kind: input, shape index: {}]
  %s2 = inlined_call_operand.hbm [shape: f32[512,256], index: 2, kind: input, shape index: {}]
  %s3 = inlined_call_operand.vmem [shape: f32[256,128], index: 3, kind: input, shape index: {}]
  %s4 = inlined_call_operand.vmem [shape: f32[128,64], index: 4, kind: input, shape index: {}]
  %s5 = inlined_call_operand.vmem [shape: f32[64,32], index: 5, kind: input, shape index: {}]
  %s6 = inlined_call_operand.vmem [shape: f32[32,8], index: 6, kind: input, shape index: {}]
  %s7 = inlined_call_operand.vmem [shape: f32[8,32], index: 7, kind: input, shape index: {}]
  %s8 = inlined_call_operand.vmem [shape: f32[32,64], index: 8, kind: input, shape index: {}]
  %s9 = inlined_call_operand.vmem [shape: f32[64,128], index: 9, kind: input, shape index: {}]
  %s10 = inlined_call_operand.vmem [shape: f32[128,256], index: 10, kind: input, shape index: {}]
  %s11 = inlined_call_operand.hbm [shape: f32[256,512], index: 11, kind: input, shape index: {}]
  %s12 = inlined_call_operand.vmem [shape: f32[512,16], index: 12, kind: input, shape index: {}]
  %s13 = inlined_call_operand.vmem [shape: f32[14,512], index: 13, kind: input, shape index: {}]
  %s14 = inlined_call_operand.vmem [shape: f32[96,16], index: 14, kind: output, shape index: {0}]
  %s15 = inlined_call_operand.vmem [shape: f32[96,1], index: 15, kind: output, shape index: {1}]
  %16 = xla_tuple %s14, %s15
  %s17 = sld [smem:[#allocation0]]
  $region105: #{tpu_custom_call.1} parent=0
    _
  %s19 = ssub.s32 1, %s17
  %s20 = scalar_select 0, %s19, %s17
  $region1: #{tpu_custom_call.1} parent=0
    #allocation2 [shape = 'u8[524288]{0}', space=vmem, size = 0x80000, scoped, tag = 'input window, operand 2, single buffered']
    #allocation3 [shape = 's32[2]{0}', space=sflag, size = 0x8, scoped, tag = 'scoped memory for tpu_custom_call.1']
    #allocation4 [shape = 'u8[524288]{0}', space=vmem, size = 0x80000, scoped, tag = 'input window, operand 11, single buffered']
    #allocation5 [shape = 's32[1]{0}', space=sflag, size = 0x4, scoped, tag = 'scoped memory for tpu_custom_call.1']
    %21 = vsyncpa [#allocation3], 0
    %22 = vsyncpa [#allocation5], 0
    loop: start=0, step=1, limit=5
    $region2: #{tpu_custom_call.1} parent=1 // loop_pre_header
      _
    $region3: #{tpu_custom_call.1} parent=1 // loop_header
      %s24 = sphi 0, %s28
      %p25 = scmp.ge.s32.totalorder %s24, 5
      %s34 = sphi 0, %s36
      %s37 = sphi 0, %s34
      %s38 = sphi 0, %s37
      %s54 = sphi 0, %s38
      %s58 = sphi 0, %s58
      %s60 = sphi 0, %s58
      %s61 = sphi 0, %s60
      %s75 = sphi 0, %s61
      %s79 = sphi 0, %s79
      %s81 = sphi 0, %s79
      %s82 = sphi 0, %s81
      %s96 = sphi 0, %s82
      %s100 = sphi 0, %s100
      %s102 = sphi 0, %s100
      %s103 = sphi 0, %s102
      %s117 = sphi 0, %s103
      %s121 = sphi 0, %s121
      %s123 = sphi 0, %s121
      %s124 = sphi 0, %s123
      %s138 = sphi 0, %s124
      %s142 = sphi 0, %s142
      %s144 = sphi 0, %s142
      %s145 = sphi 0, %s144
      %s159 = sphi 0, %s145
      %s163 = sphi 0, %s163
      %s165 = sphi 0, %s163
      %s166 = sphi 0, %s165
      %s180 = sphi 0, %s166
      %s184 = sphi 0, %s184
      %s186 = sphi 0, %s184
      %s187 = sphi 0, %s186
      %s201 = sphi 0, %s187
      %s205 = sphi 0, %s205
      %s207 = sphi 0, %s205
      %s208 = sphi 0, %s207
      %s222 = sphi 0, %s208
      %s226 = sphi 0, %s226
      %s228 = sphi 0, %s226
      %s229 = sphi 0, %s228
      %s243 = sphi 0, %s229
      %s247 = sphi 0, %s247
      %s249 = sphi 0, %s247
      %s250 = sphi 0, %s249
      %s264 = sphi 0, %s250
      %s268 = sphi 0, %s268
      %s270 = sphi 0, %s268
      %s271 = sphi 0, %s270
      %s285 = sphi 0, %s271
      %s289 = sphi 0, %s289
      %s291 = sphi 0, %s289
      %s292 = sphi 0, %s291
      %s306 = sphi 0, %s292
      %s310 = sphi 0, %s310
      %s312 = sphi 0, %s310
      %s313 = sphi 0, %s312
      %s327 = sphi 0, %s313
      %s333 = sphi 0, %s335
      %s336 = sphi 0, %s333
      %s337 = sphi 0, %s336
      %s353 = sphi 0, %s337
      %s359 = sphi 0, %s361
      %s362 = sphi 0, %s359
      %s363 = sphi 0, %s362
      %s379 = sphi 0, %s363
    $region4: #{tpu_custom_call.1} parent=1 // loop_header_branch
      %27 = sbr.rel (%p25) target = $region8
    $region5: #{tpu_custom_call.1} parent=1 // loop_body
      %s29 = ssub.s32 %s24, 1
      %s30 = ssub.s32 %s24, 2
      %s31 = sadd.s32 %s24, 1
      %s32 = ssub.s32 %s24, %s31
      %p33 = scmp.eq.s32.totalorder %s32, 0
      %s35 = sadd.s32 %s34, 1
      %s36 = scalar_select %p33, %s34, %s35
      %p39 = pneg %p33
      %p40 = scmp.eq.s32.totalorder %s24, 2
      %p41 = por %p39, %p40
      %p42 = scmp.ne.s32.totalorder %s34, %s37
      %p43 = scmp.eq.s32.totalorder %s24, 0
      %p44 = por %p42, %p43
      %p45 = scmp.ne.s32.totalorder %s34, %s37
      %p46 = scmp.eq.s32.totalorder %s29, 2
      %p47 = por %p45, %p46
      %p48 = scmp.ne.s32.totalorder %s37, %s38
      %p49 = scmp.eq.s32.totalorder %s29, 0
      %p50 = por %p48, %p49
      %p51 = scmp.ne.s32.totalorder %s37, %s38
      %p52 = scmp.eq.s32.totalorder %s30, 2
      %p53 = por %p51, %p52
      %p55 = scmp.ne.s32.totalorder %s38, %s54
      %p56 = scmp.eq.s32.totalorder %s30, 0
      %p57 = por %p55, %p56
      %s59 = sadd.s32 %s58, 1
      %p62 = scmp.eq.s32.totalorder %s24, 2
      %p63 = scmp.ne.s32.totalorder %s58, %s60
      %p64 = scmp.eq.s32.totalorder %s24, 0
      %p65 = por %p63, %p64
      %p66 = scmp.ne.s32.totalorder %s58, %s60
      %p67 = scmp.eq.s32.totalorder %s29, 2
      %p68 = por %p66, %p67
      %p69 = scmp.ne.s32.totalorder %s60, %s61
      %p70 = scmp.eq.s32.totalorder %s29, 0
      %p71 = por %p69, %p70
      %p72 = scmp.ne.s32.totalorder %s60, %s61
      %p73 = scmp.eq.s32.totalorder %s30, 2
      %p74 = por %p72, %p73
      %p76 = scmp.ne.s32.totalorder %s61, %s75
      %p77 = scmp.eq.s32.totalorder %s30, 0
      %p78 = por %p76, %p77
      %s80 = sadd.s32 %s79, 1
      %p83 = scmp.eq.s32.totalorder %s24, 2
      %p84 = scmp.ne.s32.totalorder %s79, %s81
      %p85 = scmp.eq.s32.totalorder %s24, 0
      %p86 = por %p84, %p85
      %p87 = scmp.ne.s32.totalorder %s79, %s81
      %p88 = scmp.eq.s32.totalorder %s29, 2
      %p89 = por %p87, %p88
      %p90 = scmp.ne.s32.totalorder %s81, %s82
      %p91 = scmp.eq.s32.totalorder %s29, 0
      %p92 = por %p90, %p91
      %p93 = scmp.ne.s32.totalorder %s81, %s82
      %p94 = scmp.eq.s32.totalorder %s30, 2
      %p95 = por %p93, %p94
      %p97 = scmp.ne.s32.totalorder %s82, %s96
      %p98 = scmp.eq.s32.totalorder %s30, 0
      %p99 = por %p97, %p98
      %s101 = sadd.s32 %s100, 1
      %p104 = scmp.eq.s32.totalorder %s24, 2
      %p105 = scmp.ne.s32.totalorder %s100, %s102
      %p106 = scmp.eq.s32.totalorder %s24, 0
      %p107 = por %p105, %p106
      %p108 = scmp.ne.s32.totalorder %s100, %s102
      %p109 = scmp.eq.s32.totalorder %s29, 2
      %p110 = por %p108, %p109
      %p111 = scmp.ne.s32.totalorder %s102, %s103
      %p112 = scmp.eq.s32.totalorder %s29, 0
      %p113 = por %p111, %p112
      %p114 = scmp.ne.s32.totalorder %s102, %s103
      %p115 = scmp.eq.s32.totalorder %s30, 2
      %p116 = por %p114, %p115
      %p118 = scmp.ne.s32.totalorder %s103, %s117
      %p119 = scmp.eq.s32.totalorder %s30, 0
      %p120 = por %p118, %p119
      %s122 = sadd.s32 %s121, 1
      %p125 = scmp.eq.s32.totalorder %s24, 2
      %p126 = scmp.ne.s32.totalorder %s121, %s123
      %p127 = scmp.eq.s32.totalorder %s24, 0
      %p128 = por %p126, %p127
      %p129 = scmp.ne.s32.totalorder %s121, %s123
      %p130 = scmp.eq.s32.totalorder %s29, 2
      %p131 = por %p129, %p130
      %p132 = scmp.ne.s32.totalorder %s123, %s124
      %p133 = scmp.eq.s32.totalorder %s29, 0
      %p134 = por %p132, %p133
      %p135 = scmp.ne.s32.totalorder %s123, %s124
      %p136 = scmp.eq.s32.totalorder %s30, 2
      %p137 = por %p135, %p136
      %p139 = scmp.ne.s32.totalorder %s124, %s138
      %p140 = scmp.eq.s32.totalorder %s30, 0
      %p141 = por %p139, %p140
      %s143 = sadd.s32 %s142, 1
      %p146 = scmp.eq.s32.totalorder %s24, 2
      %p147 = scmp.ne.s32.totalorder %s142, %s144
      %p148 = scmp.eq.s32.totalorder %s24, 0
      %p149 = por %p147, %p148
      %p150 = scmp.ne.s32.totalorder %s142, %s144
      %p151 = scmp.eq.s32.totalorder %s29, 2
      %p152 = por %p150, %p151
      %p153 = scmp.ne.s32.totalorder %s144, %s145
      %p154 = scmp.eq.s32.totalorder %s29, 0
      %p155 = por %p153, %p154
      %p156 = scmp.ne.s32.totalorder %s144, %s145
      %p157 = scmp.eq.s32.totalorder %s30, 2
      %p158 = por %p156, %p157
      %p160 = scmp.ne.s32.totalorder %s145, %s159
      %p161 = scmp.eq.s32.totalorder %s30, 0
      %p162 = por %p160, %p161
      %s164 = sadd.s32 %s163, 1
      %p167 = scmp.eq.s32.totalorder %s24, 2
      %p168 = scmp.ne.s32.totalorder %s163, %s165
      %p169 = scmp.eq.s32.totalorder %s24, 0
      %p170 = por %p168, %p169
      %p171 = scmp.ne.s32.totalorder %s163, %s165
      %p172 = scmp.eq.s32.totalorder %s29, 2
      %p173 = por %p171, %p172
      %p174 = scmp.ne.s32.totalorder %s165, %s166
      %p175 = scmp.eq.s32.totalorder %s29, 0
      %p176 = por %p174, %p175
      %p177 = scmp.ne.s32.totalorder %s165, %s166
      %p178 = scmp.eq.s32.totalorder %s30, 2
      %p179 = por %p177, %p178
      %p181 = scmp.ne.s32.totalorder %s166, %s180
      %p182 = scmp.eq.s32.totalorder %s30, 0
      %p183 = por %p181, %p182
      %s185 = sadd.s32 %s184, 1
      %p188 = scmp.eq.s32.totalorder %s24, 2
      %p189 = scmp.ne.s32.totalorder %s184, %s186
      %p190 = scmp.eq.s32.totalorder %s24, 0
      %p191 = por %p189, %p190
      %p192 = scmp.ne.s32.totalorder %s184, %s186
      %p193 = scmp.eq.s32.totalorder %s29, 2
      %p194 = por %p192, %p193
      %p195 = scmp.ne.s32.totalorder %s186, %s187
      %p196 = scmp.eq.s32.totalorder %s29, 0
      %p197 = por %p195, %p196
      %p198 = scmp.ne.s32.totalorder %s186, %s187
      %p199 = scmp.eq.s32.totalorder %s30, 2
      %p200 = por %p198, %p199
      %p202 = scmp.ne.s32.totalorder %s187, %s201
      %p203 = scmp.eq.s32.totalorder %s30, 0
      %p204 = por %p202, %p203
      %s206 = sadd.s32 %s205, 1
      %p209 = scmp.eq.s32.totalorder %s24, 2
      %p210 = scmp.ne.s32.totalorder %s205, %s207
      %p211 = scmp.eq.s32.totalorder %s24, 0
      %p212 = por %p210, %p211
      %p213 = scmp.ne.s32.totalorder %s205, %s207
      %p214 = scmp.eq.s32.totalorder %s29, 2
      %p215 = por %p213, %p214
      %p216 = scmp.ne.s32.totalorder %s207, %s208
      %p217 = scmp.eq.s32.totalorder %s29, 0
      %p218 = por %p216, %p217
      %p219 = scmp.ne.s32.totalorder %s207, %s208
      %p220 = scmp.eq.s32.totalorder %s30, 2
      %p221 = por %p219, %p220
      %p223 = scmp.ne.s32.totalorder %s208, %s222
      %p224 = scmp.eq.s32.totalorder %s30, 0
      %p225 = por %p223, %p224
      %s227 = sadd.s32 %s226, 1
      %p230 = scmp.eq.s32.totalorder %s24, 2
      %p231 = scmp.ne.s32.totalorder %s226, %s228
      %p232 = scmp.eq.s32.totalorder %s24, 0
      %p233 = por %p231, %p232
      %p234 = scmp.ne.s32.totalorder %s226, %s228
      %p235 = scmp.eq.s32.totalorder %s29, 2
      %p236 = por %p234, %p235
      %p237 = scmp.ne.s32.totalorder %s228, %s229
      %p238 = scmp.eq.s32.totalorder %s29, 0
      %p239 = por %p237, %p238
      %p240 = scmp.ne.s32.totalorder %s228, %s229
      %p241 = scmp.eq.s32.totalorder %s30, 2
      %p242 = por %p240, %p241
      %p244 = scmp.ne.s32.totalorder %s229, %s243
      %p245 = scmp.eq.s32.totalorder %s30, 0
      %p246 = por %p244, %p245
      %s248 = sadd.s32 %s247, 1
      %p251 = scmp.eq.s32.totalorder %s24, 2
      %p252 = scmp.ne.s32.totalorder %s247, %s249
      %p253 = scmp.eq.s32.totalorder %s24, 0
      %p254 = por %p252, %p253
      %p255 = scmp.ne.s32.totalorder %s247, %s249
      %p256 = scmp.eq.s32.totalorder %s29, 2
      %p257 = por %p255, %p256
      %p258 = scmp.ne.s32.totalorder %s249, %s250
      %p259 = scmp.eq.s32.totalorder %s29, 0
      %p260 = por %p258, %p259
      %p261 = scmp.ne.s32.totalorder %s249, %s250
      %p262 = scmp.eq.s32.totalorder %s30, 2
      %p263 = por %p261, %p262
      %p265 = scmp.ne.s32.totalorder %s250, %s264
      %p266 = scmp.eq.s32.totalorder %s30, 0
      %p267 = por %p265, %p266
      %s269 = sadd.s32 %s268, 1
      %p272 = scmp.eq.s32.totalorder %s24, 2
      %p273 = scmp.ne.s32.totalorder %s268, %s270
      %p274 = scmp.eq.s32.totalorder %s24, 0
      %p275 = por %p273, %p274
      %p276 = scmp.ne.s32.totalorder %s268, %s270
      %p277 = scmp.eq.s32.totalorder %s29, 2
      %p278 = por %p276, %p277
      %p279 = scmp.ne.s32.totalorder %s270, %s271
      %p280 = scmp.eq.s32.totalorder %s29, 0
      %p281 = por %p279, %p280
      %p282 = scmp.ne.s32.totalorder %s270, %s271
      %p283 = scmp.eq.s32.totalorder %s30, 2
      %p284 = por %p282, %p283
      %p286 = scmp.ne.s32.totalorder %s271, %s285
      %p287 = scmp.eq.s32.totalorder %s30, 0
      %p288 = por %p286, %p287
      %s290 = sadd.s32 %s289, 1
      %p293 = scmp.eq.s32.totalorder %s24, 2
      %p294 = scmp.ne.s32.totalorder %s289, %s291
      %p295 = scmp.eq.s32.totalorder %s24, 0
      %p296 = por %p294, %p295
      %p297 = scmp.ne.s32.totalorder %s289, %s291
      %p298 = scmp.eq.s32.totalorder %s29, 2
      %p299 = por %p297, %p298
      %p300 = scmp.ne.s32.totalorder %s291, %s292
      %p301 = scmp.eq.s32.totalorder %s29, 0
      %p302 = por %p300, %p301
      %p303 = scmp.ne.s32.totalorder %s291, %s292
      %p304 = scmp.eq.s32.totalorder %s30, 2
      %p305 = por %p303, %p304
      %p307 = scmp.ne.s32.totalorder %s292, %s306
      %p308 = scmp.eq.s32.totalorder %s30, 0
      %p309 = por %p307, %p308
      %s311 = sadd.s32 %s310, 1
      %p314 = scmp.eq.s32.totalorder %s24, 2
      %p315 = scmp.ne.s32.totalorder %s310, %s312
      %p316 = scmp.eq.s32.totalorder %s24, 0
      %p317 = por %p315, %p316
      %p318 = scmp.ne.s32.totalorder %s310, %s312
      %p319 = scmp.eq.s32.totalorder %s29, 2
      %p320 = por %p318, %p319
      %p321 = scmp.ne.s32.totalorder %s312, %s313
      %p322 = scmp.eq.s32.totalorder %s29, 0
      %p323 = por %p321, %p322
      %p324 = scmp.ne.s32.totalorder %s312, %s313
      %p325 = scmp.eq.s32.totalorder %s30, 2
      %p326 = por %p324, %p325
      %p328 = scmp.ne.s32.totalorder %s313, %s327
      %p329 = scmp.eq.s32.totalorder %s30, 0
      %p330 = por %p328, %p329
      %s331 = ssub.s32 %s24, %s31
      %p332 = scmp.eq.s32.totalorder %s331, 0
      %s334 = sadd.s32 %s333, 1
      %s335 = scalar_select %p332, %s333, %s334
      %p338 = pneg %p332
      %p339 = scmp.eq.s32.totalorder %s24, 2
      %p340 = por %p338, %p339
      %p341 = scmp.ne.s32.totalorder %s333, %s336
      %p342 = scmp.eq.s32.totalorder %s24, 0
      %p343 = por %p341, %p342
      %p344 = scmp.ne.s32.totalorder %s333, %s336
      %p345 = scmp.eq.s32.totalorder %s29, 2
      %p346 = por %p344, %p345
      %p347 = scmp.ne.s32.totalorder %s336, %s337
      %p348 = scmp.eq.s32.totalorder %s29, 0
      %p349 = por %p347, %p348
      %p350 = scmp.ne.s32.totalorder %s336, %s337
      %p351 = scmp.eq.s32.totalorder %s30, 2
      %p352 = por %p350, %p351
      %p354 = scmp.ne.s32.totalorder %s337, %s353
      %p355 = scmp.eq.s32.totalorder %s30, 0
      %p356 = por %p354, %p355
      %s357 = ssub.s32 %s24, %s31
      %p358 = scmp.eq.s32.totalorder %s357, 0
      %s360 = sadd.s32 %s359, 1
      %s361 = scalar_select %p358, %s359, %s360
      %p364 = pneg %p358
      %p365 = scmp.eq.s32.totalorder %s24, 2
      %p366 = por %p364, %p365
      %p367 = scmp.ne.s32.totalorder %s359, %s362
      %p368 = scmp.eq.s32.totalorder %s24, 0
      %p369 = por %p367, %p368
      %p370 = scmp.ne.s32.totalorder %s359, %s362
      %p371 = scmp.eq.s32.totalorder %s29, 2
      %p372 = por %p370, %p371
      %p373 = scmp.ne.s32.totalorder %s362, %s363
      %p374 = scmp.eq.s32.totalorder %s29, 0
      %p375 = por %p373, %p374
      %p376 = scmp.ne.s32.totalorder %s362, %s363
      %p377 = scmp.eq.s32.totalorder %s30, 2
      %p378 = por %p376, %p377
      %p380 = scmp.ne.s32.totalorder %s363, %s379
      %p381 = scmp.eq.s32.totalorder %s30, 0
      %p382 = por %p380, %p381
      %p383 = scmp.le.s32.totalorder 1, %s24
      %p384 = scmp.lt.s32.totalorder %s24, 4
      %p385 = pnand %p383, %p384
      %p386 = pneg %p385
      // Predicated region
      $region9: #{tpu_custom_call.1} parent=5 // pred_check
        _
      $region10: #{tpu_custom_call.1} parent=5 // pred_check_branch
        %388 = sbr.rel (%p385) target = $region12
      $region11: #{tpu_custom_call.1} parent=5 // pred_region
        %s389 = ssub.s32 %s24, 1
        // Predicated region
        $region13: #{tpu_custom_call.1} parent=11 // pred_check
          %p390 = pneg %p71
        $region14: #{tpu_custom_call.1} parent=11 // pred_check_branch
          %392 = sbr.rel (%p390) target = $region16
        $region15: #{tpu_custom_call.1} parent=11 // pred_region
          _
        $region16: #{tpu_custom_call.1} parent=11 // pred_fallthru
          _
        // Predicated region
        $region17: #{tpu_custom_call.1} parent=11 // pred_check
          %p393 = pneg %p92
        $region18: #{tpu_custom_call.1} parent=11 // pred_check_branch
          %395 = sbr.rel (%p393) target = $region20
        $region19: #{tpu_custom_call.1} parent=11 // pred_region
          %397 = vsyncadd [#allocation3], 0
          %s398 = sshll.u32 %s2, 4
          %s399 = int_to_ptr.hbm [resolvable:$true] %s398
          %s400 = sshll.u32 [#allocation2], 4
          %s401 = int_to_ptr.vmem [resolvable:$true] %s400
          %406 = dma.hbm_to_vmem [thread:$0]  %s399, 16384, %s401, [#allocation3], 256, 256, 16
        $region20: #{tpu_custom_call.1} parent=11 // pred_fallthru
          _
        // Predicated region
        $region21: #{tpu_custom_call.1} parent=11 // pred_check
          %p407 = pneg %p113
        $region22: #{tpu_custom_call.1} parent=11 // pred_check_branch
          %409 = sbr.rel (%p407) target = $region24
        $region23: #{tpu_custom_call.1} parent=11 // pred_region
          _
        $region24: #{tpu_custom_call.1} parent=11 // pred_fallthru
          _
        // Predicated region
        $region25: #{tpu_custom_call.1} parent=11 // pred_check
          %p410 = pneg %p134
        $region26: #{tpu_custom_call.1} parent=11 // pred_check_branch
          %412 = sbr.rel (%p410) target = $region28
        $region27: #{tpu_custom_call.1} parent=11 // pred_region
          _
        $region28: #{tpu_custom_call.1} parent=11 // pred_fallthru
          _
        // Predicated region
        $region29: #{tpu_custom_call.1} parent=11 // pred_check
          %p413 = pneg %p155
        $region30: #{tpu_custom_call.1} parent=11 // pred_check_branch
          %415 = sbr.rel (%p413) target = $region32
        $region31: #{tpu_custom_call.1} parent=11 // pred_region
          _
        $region32: #{tpu_custom_call.1} parent=11 // pred_fallthru
          _
        // Predicated region
        $region33: #{tpu_custom_call.1} parent=11 // pred_check
          %p416 = pneg %p176
        $region34: #{tpu_custom_call.1} parent=11 // pred_check_branch
          %418 = sbr.rel (%p416) target = $region36
        $region35: #{tpu_custom_call.1} parent=11 // pred_region
          _
        $region36: #{tpu_custom_call.1} parent=11 // pred_fallthru
          _
        // Predicated region
        $region37: #{tpu_custom_call.1} parent=11 // pred_check
          %p419 = pneg %p197
        $region38: #{tpu_custom_call.1} parent=11 // pred_check_branch
          %421 = sbr.rel (%p419) target = $region40
        $region39: #{tpu_custom_call.1} parent=11 // pred_region
          _
        $region40: #{tpu_custom_call.1} parent=11 // pred_fallthru
          _
        // Predicated region
        $region41: #{tpu_custom_call.1} parent=11 // pred_check
          %p422 = pneg %p218
        $region42: #{tpu_custom_call.1} parent=11 // pred_check_branch
          %424 = sbr.rel (%p422) target = $region44
        $region43: #{tpu_custom_call.1} parent=11 // pred_region
          _
        $region44: #{tpu_custom_call.1} parent=11 // pred_fallthru
          _
        // Predicated region
        $region45: #{tpu_custom_call.1} parent=11 // pred_check
          %p425 = pneg %p239
        $region46: #{tpu_custom_call.1} parent=11 // pred_check_branch
          %427 = sbr.rel (%p425) target = $region48
        $region47: #{tpu_custom_call.1} parent=11 // pred_region
          _
        $region48: #{tpu_custom_call.1} parent=11 // pred_fallthru
          _
        // Predicated region
        $region49: #{tpu_custom_call.1} parent=11 // pred_check
          %p428 = pneg %p260
        $region50: #{tpu_custom_call.1} parent=11 // pred_check_branch
          %430 = sbr.rel (%p428) target = $region52
        $region51: #{tpu_custom_call.1} parent=11 // pred_region
          _
        $region52: #{tpu_custom_call.1} parent=11 // pred_fallthru
          _
        // Predicated region
        $region53: #{tpu_custom_call.1} parent=11 // pred_check
          %p431 = pneg %p281
        $region54: #{tpu_custom_call.1} parent=11 // pred_check_branch
          %433 = sbr.rel (%p431) target = $region56
        $region55: #{tpu_custom_call.1} parent=11 // pred_region
          %435 = vsyncadd [#allocation5], 0
          %s436 = sshll.u32 %s11, 4
          %s437 = int_to_ptr.hbm [resolvable:$true] %s436
          %s438 = sshll.u32 [#allocation4], 4
          %s439 = int_to_ptr.vmem [resolvable:$true] %s438
          %444 = dma.hbm_to_vmem [thread:$0]  %s437, 16384, %s439, [#allocation5], 512, 512, 32
        $region56: #{tpu_custom_call.1} parent=11 // pred_fallthru
          _
        // Predicated region
        $region57: #{tpu_custom_call.1} parent=11 // pred_check
          %p445 = pneg %p302
        $region58: #{tpu_custom_call.1} parent=11 // pred_check_branch
          %447 = sbr.rel (%p445) target = $region60
        $region59: #{tpu_custom_call.1} parent=11 // pred_region
          _
        $region60: #{tpu_custom_call.1} parent=11 // pred_fallthru
          _
        // Predicated region
        $region61: #{tpu_custom_call.1} parent=11 // pred_check
          %p448 = pneg %p323
        $region62: #{tpu_custom_call.1} parent=11 // pred_check_branch
          %450 = sbr.rel (%p448) target = $region64
        $region63: #{tpu_custom_call.1} parent=11 // pred_region
          _
        $region64: #{tpu_custom_call.1} parent=11 // pred_fallthru
          _
      $region12: #{tpu_custom_call.1} parent=5 // pred_fallthru
        _
      %p451 = scmp.lt.s32.totalorder %s24, 3
      // Predicated region
      $region65: #{tpu_custom_call.1} parent=5 // pred_check
        %p452 = pneg %p451
      $region66: #{tpu_custom_call.1} parent=5 // pred_check_branch
        %454 = sbr.rel (%p452) target = $region68
      $region67: #{tpu_custom_call.1} parent=5 // pred_region
        // Predicated region
        $region69: #{tpu_custom_call.1} parent=67 // pred_check
          %p455 = pneg %p44
        $region70: #{tpu_custom_call.1} parent=67 // pred_check_branch
          %457 = sbr.rel (%p455) target = $region72
        $region71: #{tpu_custom_call.1} parent=67 // pred_region
          %s458 = smul.u32 4, %s24
          %p459 = scmp.lt.s32.totalorder %s458, 11
          %s460 = scalar_select %p459, %s458, 11
          %s461 = smul.addr %s460, 8
          %s462 = scalar_lea.vmem %s0, %s461
          %s463 = smul.u32 4, %s24
        $region72: #{tpu_custom_call.1} parent=67 // pred_fallthru
          _
      $region68: #{tpu_custom_call.1} parent=5 // pred_fallthru
        _
      %p464 = scmp.le.s32.totalorder 1, %s24
      %p465 = scmp.lt.s32.totalorder %s24, 4
      %p466 = pnand %p464, %p465
      %p467 = pneg %p466
      // Predicated region
      $region73: #{tpu_custom_call.1} parent=5 // pred_check
        _
      $region74: #{tpu_custom_call.1} parent=5 // pred_check_branch
        %469 = sbr.rel (%p466) target = $region76
      $region75: #{tpu_custom_call.1} parent=5 // pred_region
        %s470 = ssub.s32 %s24, 1
        // Predicated region
        $region77: #{tpu_custom_call.1} parent=75 // pred_check
          %p471 = pneg %p92
        $region78: #{tpu_custom_call.1} parent=75 // pred_check_branch
          %473 = sbr.rel (%p471) target = $region80
        $region79: #{tpu_custom_call.1} parent=75 // pred_region
          %475 = dma.done [#allocation3], 16384
        $region80: #{tpu_custom_call.1} parent=75 // pred_fallthru
          _
        // Predicated region
        $region81: #{tpu_custom_call.1} parent=75 // pred_check
          %p476 = pneg %p281
        $region82: #{tpu_custom_call.1} parent=75 // pred_check_branch
          %478 = sbr.rel (%p476) target = $region84
        $region83: #{tpu_custom_call.1} parent=75 // pred_region
          %480 = dma.done [#allocation5], 16384
        $region84: #{tpu_custom_call.1} parent=75 // pred_fallthru
          _
        %s481 = smul.u32 4, %s29
        %p482 = scmp.lt.s32.totalorder %s481, 11
        %s483 = scalar_select %p482, %s481, 11
        %s484 = smul.addr %s483, 8
        %s485 = scalar_lea.vmem %s0, %s484
        %p486 = pneg %p50
        %p487 = pneg %p47
        %p488 = pneg %p71
        %p489 = pneg %p68
        %p490 = pneg %p92
        %p491 = pneg %p89
        %p492 = pneg %p113
        %p493 = pneg %p110
        %p494 = pneg %p134
        %p495 = pneg %p131
        %p496 = pneg %p155
        %p497 = pneg %p152
        %p498 = pneg %p176
        %p499 = pneg %p173
        %p500 = pneg %p197
        %p501 = pneg %p194
        %p502 = pneg %p218
        %p503 = pneg %p215
        %p504 = pneg %p239
        %p505 = pneg %p236
        %p506 = pneg %p260
        %p507 = pneg %p257
        %p508 = pneg %p281
        %p509 = pneg %p278
        %p510 = pneg %p302
        %p511 = pneg %p299
        %p512 = pneg %p323
        %p513 = pneg %p320
        %p514 = pneg %p349
        %p515 = pneg %p346
        %s516 = smul.u32 4, %s29
        %p517 = scmp.lt.s32.totalorder %s516, 11
        %s518 = scalar_select %p517, %s516, 11
        %s519 = smul.addr %s518, 8
        %s520 = scalar_lea.vmem %s14, %s519
        %p521 = pneg %p375
        %p522 = pneg %p372
        %s523 = smul.u32 4, %s29
        %p524 = scmp.lt.s32.totalorder %s523, 11
        %s525 = scalar_select %p524, %s523, 11
        %s526 = smul.addr %s525, 8
        %s527 = scalar_lea.vmem %s15, %s526
        %s528 = smul.u32 4, %s29
        %p529 = scmp.lt.s32.totalorder %s528, 11
        %s530 = scalar_select %p529, %s528, 11
        %s531 = smul.addr %s530, 8
        %s532 = scalar_lea.vmem %s0, %s531
        %s533 = smul.u32 4, %s29
        %s534 = smul.u32 4, %s29
        %p535 = scmp.lt.s32.totalorder %s534, 11
        %s536 = scalar_select %p535, %s534, 11
        %s537 = smul.addr %s536, 8
        %s538 = scalar_lea.vmem %s14, %s537
        %s539 = smul.u32 4, %s29
        %s540 = smul.u32 4, %s29
        %p541 = scmp.lt.s32.totalorder %s540, 11
        %s542 = scalar_select %p541, %s540, 11
        %s543 = smul.addr %s542, 8
        %s544 = scalar_lea.vmem %s15, %s543
        %s545 = smul.u32 4, %s29
        %v546 = vld [vmem:[%s532] sm:$0xff]
        %v547 = vld [vmem:[%s532 + $0x8] sm:$0xff]
        %v548 = vld [vmem:[%s532 + $0x10] sm:$0xff]
        %v549 = vld [vmem:[%s532 + $0x18] sm:$0xff]
        %v550 = vld [vmem:[%s1] sm:$0xff]
        %v551 = vld [vmem:[%s1 + $0x8] sm:$0xff]
        %v552 = vld [vmem:[%s1 + $0x10] sm:$0xff]
        %v553 = vld [vmem:[%s1 + $0x18] sm:$0xff]
        %v554 = vld [vmem:[%s1 + $0x20] sm:$0xff]
        %v555 = vld [vmem:[%s1 + $0x28] sm:$0xff]
        %v556 = vld [vmem:[%s1 + $0x30] sm:$0xff]
        %v557 = vld [vmem:[%s1 + $0x38] sm:$0xff]
        %v558 = vld [vmem:[%s13] ss:$8 sm:$0xf]
        %v560 = vperm.slane %v558, 0
        %v561 = vperm.slane %v558, 1
        %v562 = vperm.slane %v558, 2
        %v563 = vperm.slane %v558, 3
        %vm568 = vcmask 130048
        %v570 = vsel %vm568, %v546, 0
        %v573 = vsel %vm568, %v547, 0
        %v576 = vsel %vm568, %v548, 0
        %v579 = vsel %vm568, %v549, 0
        %581 = vmatpush.msra.mxu0 0.0
        %582 = vmatpush.msra.mxu0 0.0
        %583 = vmatpush.msra.mxu0 0.0
        %584 = vmatpush.msra.mxu0 0.0
        %585 = vmatpush.msra.mxu0 0.0
        %586 = vmatpush.msra.mxu0 0.0
        %587 = vmatpush.msra.mxu0 0.0
        %588 = vmatpush.msra.mxu0 0.0
        %589 = vmatpush.msra.mxu0 0.0
        %590 = vmatpush.msra.mxu0 0.0
        %591 = vmatpush.msra.mxu0 0.0
        %592 = vmatpush.msra.mxu0 0.0
        %593 = vmatpush.msra.mxu0 0.0
        %594 = vmatpush.msra.mxu0 0.0
        %595 = vmatpush.msra.mxu0 %v554
        %596 = vmatpush.msra.mxu0 %v550
        %597 = vmatmul.f32.gmra.mxu0 %v570
        %v598 = vpop.f32.mrf.mxu0
        %v599 = vadd.f32 %v560, %v598
        %600 = vmatmul.f32.gmra.mxu0 %v573
        %v601 = vpop.f32.mrf.mxu0
        %v602 = vadd.f32 %v560, %v601
        %603 = vmatmul.f32.gmra.mxu0 %v576
        %v604 = vpop.f32.mrf.mxu0
        %v605 = vadd.f32 %v560, %v604
        %606 = vmatmul.f32.gmra.mxu0 %v579
        %v607 = vpop.f32.mrf.mxu0
        %v608 = vadd.f32 %v560, %v607
        %609 = vdwg.mxu0
        %610 = vmatpush.msra.mxu0 0.0
        %611 = vmatpush.msra.mxu0 0.0
        %612 = vmatpush.msra.mxu0 0.0
        %613 = vmatpush.msra.mxu0 0.0
        %614 = vmatpush.msra.mxu0 0.0
        %615 = vmatpush.msra.mxu0 0.0
        %616 = vmatpush.msra.mxu0 0.0
        %617 = vmatpush.msra.mxu0 0.0
        %618 = vmatpush.msra.mxu0 0.0
        %619 = vmatpush.msra.mxu0 0.0
        %620 = vmatpush.msra.mxu0 0.0
        %621 = vmatpush.msra.mxu0 0.0
        %622 = vmatpush.msra.mxu0 0.0
        %623 = vmatpush.msra.mxu0 0.0
        %624 = vmatpush.msra.mxu0 %v555
        %625 = vmatpush.msra.mxu0 %v551
        %626 = vmatmul.f32.gmra.mxu0 %v570
        %v627 = vpop.f32.mrf.mxu0
        %v628 = vadd.f32 %v561, %v627
        %629 = vmatmul.f32.gmra.mxu0 %v573
        %v630 = vpop.f32.mrf.mxu0
        %v631 = vadd.f32 %v561, %v630
        %632 = vmatmul.f32.gmra.mxu0 %v576
        %v633 = vpop.f32.mrf.mxu0
        %v634 = vadd.f32 %v561, %v633
        %635 = vmatmul.f32.gmra.mxu0 %v579
        %v636 = vpop.f32.mrf.mxu0
        %v637 = vadd.f32 %v561, %v636
        %638 = vdwg.mxu0
        %639 = vmatpush.msra.mxu0 0.0
        %640 = vmatpush.msra.mxu0 0.0
        %641 = vmatpush.msra.mxu0 0.0
        %642 = vmatpush.msra.mxu0 0.0
        %643 = vmatpush.msra.mxu0 0.0
        %644 = vmatpush.msra.mxu0 0.0
        %645 = vmatpush.msra.mxu0 0.0
        %646 = vmatpush.msra.mxu0 0.0
        %647 = vmatpush.msra.mxu0 0.0
        %648 = vmatpush.msra.mxu0 0.0
        %649 = vmatpush.msra.mxu0 0.0
        %650 = vmatpush.msra.mxu0 0.0
        %651 = vmatpush.msra.mxu0 0.0
        %652 = vmatpush.msra.mxu0 0.0
        %653 = vmatpush.msra.mxu0 %v556
        %654 = vmatpush.msra.mxu0 %v552
        %655 = vmatmul.f32.gmra.mxu0 %v570
        %v656 = vpop.f32.mrf.mxu0
        %v657 = vadd.f32 %v562, %v656
        %658 = vmatmul.f32.gmra.mxu0 %v573
        %v659 = vpop.f32.mrf.mxu0
        %v660 = vadd.f32 %v562, %v659
        %661 = vmatmul.f32.gmra.mxu0 %v576
        %v662 = vpop.f32.mrf.mxu0
        %v663 = vadd.f32 %v562, %v662
        %664 = vmatmul.f32.gmra.mxu0 %v579
        %v665 = vpop.f32.mrf.mxu0
        %v666 = vadd.f32 %v562, %v665
        %667 = vdwg.mxu0
        %668 = vmatpush.msra.mxu0 0.0
        %669 = vmatpush.msra.mxu0 0.0
        %670 = vmatpush.msra.mxu0 0.0
        %671 = vmatpush.msra.mxu0 0.0
        %672 = vmatpush.msra.mxu0 0.0
        %673 = vmatpush.msra.mxu0 0.0
        %674 = vmatpush.msra.mxu0 0.0
        %675 = vmatpush.msra.mxu0 0.0
        %676 = vmatpush.msra.mxu0 0.0
        %677 = vmatpush.msra.mxu0 0.0
        %678 = vmatpush.msra.mxu0 0.0
        %679 = vmatpush.msra.mxu0 0.0
        %680 = vmatpush.msra.mxu0 0.0
        %681 = vmatpush.msra.mxu0 0.0
        %682 = vmatpush.msra.mxu0 %v557
        %683 = vmatpush.msra.mxu0 %v553
        %684 = vmatmul.f32.gmra.mxu0 %v570
        %v685 = vpop.f32.mrf.mxu0
        %v686 = vadd.f32 %v563, %v685
        %687 = vmatmul.f32.gmra.mxu0 %v573
        %v688 = vpop.f32.mrf.mxu0
        %v689 = vadd.f32 %v563, %v688
        %690 = vmatmul.f32.gmra.mxu0 %v576
        %v691 = vpop.f32.mrf.mxu0
        %v692 = vadd.f32 %v563, %v691
        %693 = vmatmul.f32.gmra.mxu0 %v579
        %v694 = vpop.f32.mrf.mxu0
        %v695 = vadd.f32 %v563, %v694
        %696 = vdwg.mxu0
        %v697 = vmax.f32 %v599, 0.0
        %v698 = vmax.f32 %v628, 0.0
        %v699 = vmax.f32 %v657, 0.0
        %v700 = vmax.f32 %v686, 0.0
        %v701 = vmax.f32 %v602, 0.0
        %v702 = vmax.f32 %v631, 0.0
        %v703 = vmax.f32 %v660, 0.0
        %v704 = vmax.f32 %v689, 0.0
        %v705 = vmax.f32 %v605, 0.0
        %v706 = vmax.f32 %v634, 0.0
        %v707 = vmax.f32 %v663, 0.0
        %v708 = vmax.f32 %v692, 0.0
        %v709 = vmax.f32 %v608, 0.0
        %v710 = vmax.f32 %v637, 0.0
        %v711 = vmax.f32 %v666, 0.0
        %v712 = vmax.f32 %v695, 0.0
        %v713 = vld [vmem:[#allocation2] sm:$0xff]
        %v714 = vld [vmem:[#allocation2 + $0x8] sm:$0xff]
        %v715 = vld [vmem:[#allocation2 + $0x10] sm:$0xff]
        %v716 = vld [vmem:[#allocation2 + $0x18] sm:$0xff]
        %v717 = vld [vmem:[#allocation2 + $0x20] sm:$0xff]
        %v718 = vld [vmem:[#allocation2 + $0x28] sm:$0xff]
        %v719 = vld [vmem:[#allocation2 + $0x30] sm:$0xff]
        %v720 = vld [vmem:[#allocation2 + $0x38] sm:$0xff]
        %v721 = vld [vmem:[#allocation2 + $0x40] sm:$0xff]
        %v722 = vld [vmem:[#allocation2 + $0x48] sm:$0xff]
        %v723 = vld [vmem:[#allocation2 + $0x50] sm:$0xff]
        %v724 = vld [vmem:[#allocation2 + $0x58] sm:$0xff]
        %v725 = vld [vmem:[#allocation2 + $0x60] sm:$0xff]
        %v726 = vld [vmem:[#allocation2 + $0x68] sm:$0xff]
        %v727 = vld [vmem:[#allocation2 + $0x70] sm:$0xff]
        %v728 = vld [vmem:[#allocation2 + $0x78] sm:$0xff]
        %v729 = vld [vmem:[#allocation2 + $0x80] sm:$0xff]
        %v730 = vld [vmem:[#allocation2 + $0x88] sm:$0xff]
        %v731 = vld [vmem:[#allocation2 + $0x90] sm:$0xff]
        %v732 = vld [vmem:[#allocation2 + $0x98] sm:$0xff]
        %v733 = vld [vmem:[#allocation2 + $0xa0] sm:$0xff]
        %v734 = vld [vmem:[#allocation2 + $0xa8] sm:$0xff]
        %v735 = vld [vmem:[#allocation2 + $0xb0] sm:$0xff]
        %v736 = vld [vmem:[#allocation2 + $0xb8] sm:$0xff]
        %v737 = vld [vmem:[#allocation2 + $0xc0] sm:$0xff]
        %v738 = vld [vmem:[#allocation2 + $0xc8] sm:$0xff]
        %v739 = vld [vmem:[#allocation2 + $0xd0] sm:$0xff]
        %v740 = vld [vmem:[#allocation2 + $0xd8] sm:$0xff]
        %v741 = vld [vmem:[#allocation2 + $0xe0] sm:$0xff]
        %v742 = vld [vmem:[#allocation2 + $0xe8] sm:$0xff]
        %v743 = vld [vmem:[#allocation2 + $0xf0] sm:$0xff]
        %v744 = vld [vmem:[#allocation2 + $0xf8] sm:$0xff]
        %v745 = vld [vmem:[#allocation2 + $0x100] sm:$0xff]
        %v746 = vld [vmem:[#allocation2 + $0x108] sm:$0xff]
        %v747 = vld [vmem:[#allocation2 + $0x110] sm:$0xff]
        %v748 = vld [vmem:[#allocation2 + $0x118] sm:$0xff]
        %v749 = vld [vmem:[#allocation2 + $0x120] sm:$0xff]
        %v750 = vld [vmem:[#allocation2 + $0x128] sm:$0xff]
        %v751 = vld [vmem:[#allocation2 + $0x130] sm:$0xff]
        %v752 = vld [vmem:[#allocation2 + $0x138] sm:$0xff]
        %v753 = vld [vmem:[#allocation2 + $0x140] sm:$0xff]
        %v754 = vld [vmem:[#allocation2 + $0x148] sm:$0xff]
        %v755 = vld [vmem:[#allocation2 + $0x150] sm:$0xff]
        %v756 = vld [vmem:[#allocation2 + $0x158] sm:$0xff]
        %v757 = vld [vmem:[#allocation2 + $0x160] sm:$0xff]
        %v758 = vld [vmem:[#allocation2 + $0x168] sm:$0xff]
        %v759 = vld [vmem:[#allocation2 + $0x170] sm:$0xff]
        %v760 = vld [vmem:[#allocation2 + $0x178] sm:$0xff]
        %v761 = vld [vmem:[#allocation2 + $0x180] sm:$0xff]
        %v762 = vld [vmem:[#allocation2 + $0x188] sm:$0xff]
        %v763 = vld [vmem:[#allocation2 + $0x190] sm:$0xff]
        %v764 = vld [vmem:[#allocation2 + $0x198] sm:$0xff]
        %v765 = vld [vmem:[#allocation2 + $0x1a0] sm:$0xff]
        %v766 = vld [vmem:[#allocation2 + $0x1a8] sm:$0xff]
        %v767 = vld [vmem:[#allocation2 + $0x1b0] sm:$0xff]
        %v768 = vld [vmem:[#allocation2 + $0x1b8] sm:$0xff]
        %v769 = vld [vmem:[#allocation2 + $0x1c0] sm:$0xff]
        %v770 = vld [vmem:[#allocation2 + $0x1c8] sm:$0xff]
        %v771 = vld [vmem:[#allocation2 + $0x1d0] sm:$0xff]
        %v772 = vld [vmem:[#allocation2 + $0x1d8] sm:$0xff]
        %v773 = vld [vmem:[#allocation2 + $0x1e0] sm:$0xff]
        %v774 = vld [vmem:[#allocation2 + $0x1e8] sm:$0xff]
        %v775 = vld [vmem:[#allocation2 + $0x1f0] sm:$0xff]
        %v776 = vld [vmem:[#allocation2 + $0x1f8] sm:$0xff]
        %v777 = vld [vmem:[#allocation2 + $0x200] sm:$0xff]
        %v778 = vld [vmem:[#allocation2 + $0x208] sm:$0xff]
        %v779 = vld [vmem:[#allocation2 + $0x210] sm:$0xff]
        %v780 = vld [vmem:[#allocation2 + $0x218] sm:$0xff]
        %v781 = vld [vmem:[#allocation2 + $0x220] sm:$0xff]
        %v782 = vld [vmem:[#allocation2 + $0x228] sm:$0xff]
        %v783 = vld [vmem:[#allocation2 + $0x230] sm:$0xff]
        %v784 = vld [vmem:[#allocation2 + $0x238] sm:$0xff]
        %v785 = vld [vmem:[#allocation2 + $0x240] sm:$0xff]
        %v786 = vld [vmem:[#allocation2 + $0x248] sm:$0xff]
        %v787 = vld [vmem:[#allocation2 + $0x250] sm:$0xff]
        %v788 = vld [vmem:[#allocation2 + $0x258] sm:$0xff]
        %v789 = vld [vmem:[#allocation2 + $0x260] sm:$0xff]
        %v790 = vld [vmem:[#allocation2 + $0x268] sm:$0xff]
        %v791 = vld [vmem:[#allocation2 + $0x270] sm:$0xff]
        %v792 = vld [vmem:[#allocation2 + $0x278] sm:$0xff]
        %v793 = vld [vmem:[#allocation2 + $0x280] sm:$0xff]
        %v794 = vld [vmem:[#allocation2 + $0x288] sm:$0xff]
        %v795 = vld [vmem:[#allocation2 + $0x290] sm:$0xff]
        %v796 = vld [vmem:[#allocation2 + $0x298] sm:$0xff]
        %v797 = vld [vmem:[#allocation2 + $0x2a0] sm:$0xff]
        %v798 = vld [vmem:[#allocation2 + $0x2a8] sm:$0xff]
        %v799 = vld [vmem:[#allocation2 + $0x2b0] sm:$0xff]
        %v800 = vld [vmem:[#allocation2 + $0x2b8] sm:$0xff]
        %v801 = vld [vmem:[#allocation2 + $0x2c0] sm:$0xff]
        %v802 = vld [vmem:[#allocation2 + $0x2c8] sm:$0xff]
        %v803 = vld [vmem:[#allocation2 + $0x2d0] sm:$0xff]
        %v804 = vld [vmem:[#allocation2 + $0x2d8] sm:$0xff]
        %v805 = vld [vmem:[#allocation2 + $0x2e0] sm:$0xff]
        %v806 = vld [vmem:[#allocation2 + $0x2e8] sm:$0xff]
        %v807 = vld [vmem:[#allocation2 + $0x2f0] sm:$0xff]
        %v808 = vld [vmem:[#allocation2 + $0x2f8] sm:$0xff]
        %v809 = vld [vmem:[#allocation2 + $0x300] sm:$0xff]
        %v810 = vld [vmem:[#allocation2 + $0x308] sm:$0xff]
        %v811 = vld [vmem:[#allocation2 + $0x310] sm:$0xff]
        %v812 = vld [vmem:[#allocation2 + $0x318] sm:$0xff]
        %v813 = vld [vmem:[#allocation2 + $0x320] sm:$0xff]
        %v814 = vld [vmem:[#allocation2 + $0x328] sm:$0xff]
        %v815 = vld [vmem:[#allocation2 + $0x330] sm:$0xff]
        %v816 = vld [vmem:[#allocation2 + $0x338] sm:$0xff]
        %v817 = vld [vmem:[#allocation2 + $0x340] sm:$0xff]
        %v818 = vld [vmem:[#allocation2 + $0x348] sm:$0xff]
        %v819 = vld [vmem:[#allocation2 + $0x350] sm:$0xff]
        %v820 = vld [vmem:[#allocation2 + $0x358] sm:$0xff]
        %v821 = vld [vmem:[#allocation2 + $0x360] sm:$0xff]
        %v822 = vld [vmem:[#allocation2 + $0x368] sm:$0xff]
        %v823 = vld [vmem:[#allocation2 + $0x370] sm:$0xff]
        %v824 = vld [vmem:[#allocation2 + $0x378] sm:$0xff]
        %v825 = vld [vmem:[#allocation2 + $0x380] sm:$0xff]
        %v826 = vld [vmem:[#allocation2 + $0x388] sm:$0xff]
        %v827 = vld [vmem:[#allocation2 + $0x390] sm:$0xff]
        %v828 = vld [vmem:[#allocation2 + $0x398] sm:$0xff]
        %v829 = vld [vmem:[#allocation2 + $0x3a0] sm:$0xff]
        %v830 = vld [vmem:[#allocation2 + $0x3a8] sm:$0xff]
        %v831 = vld [vmem:[#allocation2 + $0x3b0] sm:$0xff]
        %v832 = vld [vmem:[#allocation2 + $0x3b8] sm:$0xff]
        %v833 = vld [vmem:[#allocation2 + $0x3c0] sm:$0xff]
        %v834 = vld [vmem:[#allocation2 + $0x3c8] sm:$0xff]
        %v835 = vld [vmem:[#allocation2 + $0x3d0] sm:$0xff]
        %v836 = vld [vmem:[#allocation2 + $0x3d8] sm:$0xff]
        %v837 = vld [vmem:[#allocation2 + $0x3e0] sm:$0xff]
        %v838 = vld [vmem:[#allocation2 + $0x3e8] sm:$0xff]
        %v839 = vld [vmem:[#allocation2 + $0x3f0] sm:$0xff]
        %v840 = vld [vmem:[#allocation2 + $0x3f8] sm:$0xff]
        %s841 = scalar_lea.vmem %s13, 1
        %v842 = vld [vmem:[%s841] ss:$8 sm:$0x3]
        %v844 = vperm.slane %v842, 0
        %v845 = vperm.slane %v842, 1
        %848 = vmatpush.msra.mxu0 %v743
        %849 = vmatpush.msra.mxu0 %v741
        %850 = vmatpush.msra.mxu0 %v739
        %851 = vmatpush.msra.mxu0 %v737
        %852 = vmatpush.msra.mxu0 %v735
        %853 = vmatpush.msra.mxu0 %v733
        %854 = vmatpush.msra.mxu0 %v731
        %855 = vmatpush.msra.mxu0 %v729
        %856 = vmatpush.msra.mxu0 %v727
        %857 = vmatpush.msra.mxu0 %v725
        %858 = vmatpush.msra.mxu0 %v723
        %859 = vmatpush.msra.mxu0 %v721
        %860 = vmatpush.msra.mxu0 %v719
        %861 = vmatpush.msra.mxu0 %v717
        %862 = vmatpush.msra.mxu0 %v715
        %863 = vmatpush.msra.mxu0 %v713
        %864 = vmatmul.f32.gmra.mxu0 %v697
        %v865 = vpop.f32.mrf.mxu0
        %v866 = vadd.f32 %v844, %v865
        %867 = vmatmul.f32.gmra.mxu0 %v701
        %v868 = vpop.f32.mrf.mxu0
        %v869 = vadd.f32 %v844, %v868
        %870 = vmatmul.f32.gmra.mxu0 %v705
        %v871 = vpop.f32.mrf.mxu0
        %v872 = vadd.f32 %v844, %v871
        %873 = vmatmul.f32.gmra.mxu0 %v709
        %v874 = vpop.f32.mrf.mxu0
        %v875 = vadd.f32 %v844, %v874
        %876 = vdwg.mxu0
        %877 = vmatpush.msra.mxu0 %v775
        %878 = vmatpush.msra.mxu0 %v773
        %879 = vmatpush.msra.mxu0 %v771
        %880 = vmatpush.msra.mxu0 %v769
        %881 = vmatpush.msra.mxu0 %v767
        %882 = vmatpush.msra.mxu0 %v765
        %883 = vmatpush.msra.mxu0 %v763
        %884 = vmatpush.msra.mxu0 %v761
        %885 = vmatpush.msra.mxu0 %v759
        %886 = vmatpush.msra.mxu0 %v757
        %887 = vmatpush.msra.mxu0 %v755
        %888 = vmatpush.msra.mxu0 %v753
        %889 = vmatpush.msra.mxu0 %v751
        %890 = vmatpush.msra.mxu0 %v749
        %891 = vmatpush.msra.mxu0 %v747
        %892 = vmatpush.msra.mxu0 %v745
        %893 = vmatmul.f32.gmra.mxu0 %v698
        %v894 = vpop.f32.mrf.mxu0
        %v895 = vadd.f32 %v866, %v894
        %896 = vmatmul.f32.gmra.mxu0 %v702
        %v897 = vpop.f32.mrf.mxu0
        %v898 = vadd.f32 %v869, %v897
        %899 = vmatmul.f32.gmra.mxu0 %v706
        %v900 = vpop.f32.mrf.mxu0
        %v901 = vadd.f32 %v872, %v900
        %902 = vmatmul.f32.gmra.mxu0 %v710
        %v903 = vpop.f32.mrf.mxu0
        %v904 = vadd.f32 %v875, %v903
        %905 = vdwg.mxu0
        %906 = vmatpush.msra.mxu0 %v807
        %907 = vmatpush.msra.mxu0 %v805
        %908 = vmatpush.msra.mxu0 %v803
        %909 = vmatpush.msra.mxu0 %v801
        %910 = vmatpush.msra.mxu0 %v799
        %911 = vmatpush.msra.mxu0 %v797
        %912 = vmatpush.msra.mxu0 %v795
        %913 = vmatpush.msra.mxu0 %v793
        %914 = vmatpush.msra.mxu0 %v791
        %915 = vmatpush.msra.mxu0 %v789
        %916 = vmatpush.msra.mxu0 %v787
        %917 = vmatpush.msra.mxu0 %v785
        %918 = vmatpush.msra.mxu0 %v783
        %919 = vmatpush.msra.mxu0 %v781
        %920 = vmatpush.msra.mxu0 %v779
        %921 = vmatpush.msra.mxu0 %v777
        %922 = vmatmul.f32.gmra.mxu0 %v699
        %v923 = vpop.f32.mrf.mxu0
        %v924 = vadd.f32 %v895, %v923
        %925 = vmatmul.f32.gmra.mxu0 %v703
        %v926 = vpop.f32.mrf.mxu0
        %v927 = vadd.f32 %v898, %v926
        %928 = vmatmul.f32.gmra.mxu0 %v707
        %v929 = vpop.f32.mrf.mxu0
        %v930 = vadd.f32 %v901, %v929
        %931 = vmatmul.f32.gmra.mxu0 %v711
        %v932 = vpop.f32.mrf.mxu0
        %v933 = vadd.f32 %v904, %v932
        %934 = vdwg.mxu0
        %935 = vmatpush.msra.mxu0 %v839
        %936 = vmatpush.msra.mxu0 %v837
        %937 = vmatpush.msra.mxu0 %v835
        %938 = vmatpush.msra.mxu0 %v833
        %939 = vmatpush.msra.mxu0 %v831
        %940 = vmatpush.msra.mxu0 %v829
        %941 = vmatpush.msra.mxu0 %v827
        %942 = vmatpush.msra.mxu0 %v825
        %943 = vmatpush.msra.mxu0 %v823
        %944 = vmatpush.msra.mxu0 %v821
        %945 = vmatpush.msra.mxu0 %v819
        %946 = vmatpush.msra.mxu0 %v817
        %947 = vmatpush.msra.mxu0 %v815
        %948 = vmatpush.msra.mxu0 %v813
        %949 = vmatpush.msra.mxu0 %v811
        %950 = vmatpush.msra.mxu0 %v809
        %951 = vmatmul.f32.gmra.mxu0 %v700
        %v952 = vpop.f32.mrf.mxu0
        %v953 = vadd.f32 %v924, %v952
        %954 = vmatmul.f32.gmra.mxu0 %v704
        %v955 = vpop.f32.mrf.mxu0
        %v956 = vadd.f32 %v927, %v955
        %957 = vmatmul.f32.gmra.mxu0 %v708
        %v958 = vpop.f32.mrf.mxu0
        %v959 = vadd.f32 %v930, %v958
        %960 = vmatmul.f32.gmra.mxu0 %v712
        %v961 = vpop.f32.mrf.mxu0
        %v962 = vadd.f32 %v933, %v961
        %963 = vdwg.mxu0
        %964 = vmatpush.msra.mxu0 %v744
        %965 = vmatpush.msra.mxu0 %v742
        %966 = vmatpush.msra.mxu0 %v740
        %967 = vmatpush.msra.mxu0 %v738
        %968 = vmatpush.msra.mxu0 %v736
        %969 = vmatpush.msra.mxu0 %v734
        %970 = vmatpush.msra.mxu0 %v732
        %971 = vmatpush.msra.mxu0 %v730
        %972 = vmatpush.msra.mxu0 %v728
        %973 = vmatpush.msra.mxu0 %v726
        %974 = vmatpush.msra.mxu0 %v724
        %975 = vmatpush.msra.mxu0 %v722
        %976 = vmatpush.msra.mxu0 %v720
        %977 = vmatpush.msra.mxu0 %v718
        %978 = vmatpush.msra.mxu0 %v716
        %979 = vmatpush.msra.mxu0 %v714
        %980 = vmatmul.f32.gmra.mxu0 %v697
        %v981 = vpop.f32.mrf.mxu0
        %v982 = vadd.f32 %v845, %v981
        %983 = vmatmul.f32.gmra.mxu0 %v701
        %v984 = vpop.f32.mrf.mxu0
        %v985 = vadd.f32 %v845, %v984
        %986 = vmatmul.f32.gmra.mxu0 %v705
        %v987 = vpop.f32.mrf.mxu0
        %v988 = vadd.f32 %v845, %v987
        %989 = vmatmul.f32.gmra.mxu0 %v709
        %v990 = vpop.f32.mrf.mxu0
        %v991 = vadd.f32 %v845, %v990
        %992 = vdwg.mxu0
        %993 = vmatpush.msra.mxu0 %v776
        %994 = vmatpush.msra.mxu0 %v774
        %995 = vmatpush.msra.mxu0 %v772
        %996 = vmatpush.msra.mxu0 %v770
        %997 = vmatpush.msra.mxu0 %v768
        %998 = vmatpush.msra.mxu0 %v766
        %999 = vmatpush.msra.mxu0 %v764
        %1000 = vmatpush.msra.mxu0 %v762
        %1001 = vmatpush.msra.mxu0 %v760
        %1002 = vmatpush.msra.mxu0 %v758
        %1003 = vmatpush.msra.mxu0 %v756
        %1004 = vmatpush.msra.mxu0 %v754
        %1005 = vmatpush.msra.mxu0 %v752
        %1006 = vmatpush.msra.mxu0 %v750
        %1007 = vmatpush.msra.mxu0 %v748
        %1008 = vmatpush.msra.mxu0 %v746
        %1009 = vmatmul.f32.gmra.mxu0 %v698
        %v1010 = vpop.f32.mrf.mxu0
        %v1011 = vadd.f32 %v982, %v1010
        %1012 = vmatmul.f32.gmra.mxu0 %v702
        %v1013 = vpop.f32.mrf.mxu0
        %v1014 = vadd.f32 %v985, %v1013
        %1015 = vmatmul.f32.gmra.mxu0 %v706
        %v1016 = vpop.f32.mrf.mxu0
        %v1017 = vadd.f32 %v988, %v1016
        %1018 = vmatmul.f32.gmra.mxu0 %v710
        %v1019 = vpop.f32.mrf.mxu0
        %v1020 = vadd.f32 %v991, %v1019
        %1021 = vdwg.mxu0
        %1022 = vmatpush.msra.mxu0 %v808
        %1023 = vmatpush.msra.mxu0 %v806
        %1024 = vmatpush.msra.mxu0 %v804
        %1025 = vmatpush.msra.mxu0 %v802
        %1026 = vmatpush.msra.mxu0 %v800
        %1027 = vmatpush.msra.mxu0 %v798
        %1028 = vmatpush.msra.mxu0 %v796
        %1029 = vmatpush.msra.mxu0 %v794
        %1030 = vmatpush.msra.mxu0 %v792
        %1031 = vmatpush.msra.mxu0 %v790
        %1032 = vmatpush.msra.mxu0 %v788
        %1033 = vmatpush.msra.mxu0 %v786
        %1034 = vmatpush.msra.mxu0 %v784
        %1035 = vmatpush.msra.mxu0 %v782
        %1036 = vmatpush.msra.mxu0 %v780
        %1037 = vmatpush.msra.mxu0 %v778
        %1038 = vmatmul.f32.gmra.mxu0 %v699
        %v1039 = vpop.f32.mrf.mxu0
        %v1040 = vadd.f32 %v1011, %v1039
        %1041 = vmatmul.f32.gmra.mxu0 %v703
        %v1042 = vpop.f32.mrf.mxu0
        %v1043 = vadd.f32 %v1014, %v1042
        %1044 = vmatmul.f32.gmra.mxu0 %v707
        %v1045 = vpop.f32.mrf.mxu0
        %v1046 = vadd.f32 %v1017, %v1045
        %1047 = vmatmul.f32.gmra.mxu0 %v711
        %v1048 = vpop.f32.mrf.mxu0
        %v1049 = vadd.f32 %v1020, %v1048
        %1050 = vdwg.mxu0
        %1051 = vmatpush.msra.mxu0 %v840
        %1052 = vmatpush.msra.mxu0 %v838
        %1053 = vmatpush.msra.mxu0 %v836
        %1054 = vmatpush.msra.mxu0 %v834
        %1055 = vmatpush.msra.mxu0 %v832
        %1056 = vmatpush.msra.mxu0 %v830
        %1057 = vmatpush.msra.mxu0 %v828
        %1058 = vmatpush.msra.mxu0 %v826
        %1059 = vmatpush.msra.mxu0 %v824
        %1060 = vmatpush.msra.mxu0 %v822
        %1061 = vmatpush.msra.mxu0 %v820
        %1062 = vmatpush.msra.mxu0 %v818
        %1063 = vmatpush.msra.mxu0 %v816
        %1064 = vmatpush.msra.mxu0 %v814
        %1065 = vmatpush.msra.mxu0 %v812
        %1066 = vmatpush.msra.mxu0 %v810
        %1067 = vmatmul.f32.gmra.mxu0 %v700
        %v1068 = vpop.f32.mrf.mxu0
        %v1069 = vadd.f32 %v1040, %v1068
        %1070 = vmatmul.f32.gmra.mxu0 %v704
        %v1071 = vpop.f32.mrf.mxu0
        %v1072 = vadd.f32 %v1043, %v1071
        %1073 = vmatmul.f32.gmra.mxu0 %v708
        %v1074 = vpop.f32.mrf.mxu0
        %v1075 = vadd.f32 %v1046, %v1074
        %1076 = vmatmul.f32.gmra.mxu0 %v712
        %v1077 = vpop.f32.mrf.mxu0
        %v1078 = vadd.f32 %v1049, %v1077
        %1079 = vdwg.mxu0
        %v1080 = vmax.f32 %v953, 0.0
        %v1081 = vmax.f32 %v1069, 0.0
        %v1082 = vmax.f32 %v956, 0.0
        %v1083 = vmax.f32 %v1072, 0.0
        %v1084 = vmax.f32 %v959, 0.0
        %v1085 = vmax.f32 %v1075, 0.0
        %v1086 = vmax.f32 %v962, 0.0
        %v1087 = vmax.f32 %v1078, 0.0
        %v1088 = vld [vmem:[%s3] sm:$0xff]
        %v1089 = vld [vmem:[%s3 + $0x8] sm:$0xff]
        %v1090 = vld [vmem:[%s3 + $0x10] sm:$0xff]
        %v1091 = vld [vmem:[%s3 + $0x18] sm:$0xff]
        %v1092 = vld [vmem:[%s3 + $0x20] sm:$0xff]
        %v1093 = vld [vmem:[%s3 + $0x28] sm:$0xff]
        %v1094 = vld [vmem:[%s3 + $0x30] sm:$0xff]
        %v1095 = vld [vmem:[%s3 + $0x38] sm:$0xff]
        %v1096 = vld [vmem:[%s3 + $0x40] sm:$0xff]
        %v1097 = vld [vmem:[%s3 + $0x48] sm:$0xff]
        %v1098 = vld [vmem:[%s3 + $0x50] sm:$0xff]
        %v1099 = vld [vmem:[%s3 + $0x58] sm:$0xff]
        %v1100 = vld [vmem:[%s3 + $0x60] sm:$0xff]
        %v1101 = vld [vmem:[%s3 + $0x68] sm:$0xff]
        %v1102 = vld [vmem:[%s3 + $0x70] sm:$0xff]
        %v1103 = vld [vmem:[%s3 + $0x78] sm:$0xff]
        %v1104 = vld [vmem:[%s3 + $0x80] sm:$0xff]
        %v1105 = vld [vmem:[%s3 + $0x88] sm:$0xff]
        %v1106 = vld [vmem:[%s3 + $0x90] sm:$0xff]
        %v1107 = vld [vmem:[%s3 + $0x98] sm:$0xff]
        %v1108 = vld [vmem:[%s3 + $0xa0] sm:$0xff]
        %v1109 = vld [vmem:[%s3 + $0xa8] sm:$0xff]
        %v1110 = vld [vmem:[%s3 + $0xb0] sm:$0xff]
        %v1111 = vld [vmem:[%s3 + $0xb8] sm:$0xff]
        %v1112 = vld [vmem:[%s3 + $0xc0] sm:$0xff]
        %v1113 = vld [vmem:[%s3 + $0xc8] sm:$0xff]
        %v1114 = vld [vmem:[%s3 + $0xd0] sm:$0xff]
        %v1115 = vld [vmem:[%s3 + $0xd8] sm:$0xff]
        %v1116 = vld [vmem:[%s3 + $0xe0] sm:$0xff]
        %v1117 = vld [vmem:[%s3 + $0xe8] sm:$0xff]
        %v1118 = vld [vmem:[%s3 + $0xf0] sm:$0xff]
        %v1119 = vld [vmem:[%s3 + $0xf8] sm:$0xff]
        %v1120 = vld [vmem:[%s13 + $0x2] ss:$0 sm:$0xff]
        %1121 = vmatpush.msra.mxu0 %v1103
        %1122 = vmatpush.msra.mxu0 %v1102
        %1123 = vmatpush.msra.mxu0 %v1101
        %1124 = vmatpush.msra.mxu0 %v1100
        %1125 = vmatpush.msra.mxu0 %v1099
        %1126 = vmatpush.msra.mxu0 %v1098
        %1127 = vmatpush.msra.mxu0 %v1097
        %1128 = vmatpush.msra.mxu0 %v1096
        %1129 = vmatpush.msra.mxu0 %v1095
        %1130 = vmatpush.msra.mxu0 %v1094
        %1131 = vmatpush.msra.mxu0 %v1093
        %1132 = vmatpush.msra.mxu0 %v1092
        %1133 = vmatpush.msra.mxu0 %v1091
        %1134 = vmatpush.msra.mxu0 %v1090
        %1135 = vmatpush.msra.mxu0 %v1089
        %1136 = vmatpush.msra.mxu0 %v1088
        %1137 = vmatmul.f32.gmra.mxu0 %v1080
        %v1138 = vpop.f32.mrf.mxu0
        %v1139 = vadd.f32 %v1120, %v1138
        %1140 = vmatmul.f32.gmra.mxu0 %v1082
        %v1141 = vpop.f32.mrf.mxu0
        %v1142 = vadd.f32 %v1120, %v1141
        %1143 = vmatmul.f32.gmra.mxu0 %v1084
        %v1144 = vpop.f32.mrf.mxu0
        %v1145 = vadd.f32 %v1120, %v1144
        %1146 = vmatmul.f32.gmra.mxu0 %v1086
        %v1147 = vpop.f32.mrf.mxu0
        %v1148 = vadd.f32 %v1120, %v1147
        %1149 = vdwg.mxu0
        %1150 = vmatpush.msra.mxu0 %v1119
        %1151 = vmatpush.msra.mxu0 %v1118
        %1152 = vmatpush.msra.mxu0 %v1117
        %1153 = vmatpush.msra.mxu0 %v1116
        %1154 = vmatpush.msra.mxu0 %v1115
        %1155 = vmatpush.msra.mxu0 %v1114
        %1156 = vmatpush.msra.mxu0 %v1113
        %1157 = vmatpush.msra.mxu0 %v1112
        %1158 = vmatpush.msra.mxu0 %v1111
        %1159 = vmatpush.msra.mxu0 %v1110
        %1160 = vmatpush.msra.mxu0 %v1109
        %1161 = vmatpush.msra.mxu0 %v1108
        %1162 = vmatpush.msra.mxu0 %v1107
        %1163 = vmatpush.msra.mxu0 %v1106
        %1164 = vmatpush.msra.mxu0 %v1105
        %1165 = vmatpush.msra.mxu0 %v1104
        %1166 = vmatmul.f32.gmra.mxu0 %v1081
        %v1167 = vpop.f32.mrf.mxu0
        %v1168 = vadd.f32 %v1139, %v1167
        %1169 = vmatmul.f32.gmra.mxu0 %v1083
        %v1170 = vpop.f32.mrf.mxu0
        %v1171 = vadd.f32 %v1142, %v1170
        %1172 = vmatmul.f32.gmra.mxu0 %v1085
        %v1173 = vpop.f32.mrf.mxu0
        %v1174 = vadd.f32 %v1145, %v1173
        %1175 = vmatmul.f32.gmra.mxu0 %v1087
        %v1176 = vpop.f32.mrf.mxu0
        %v1177 = vadd.f32 %v1148, %v1176
        %1178 = vdwg.mxu0
        %v1179 = vmax.f32 %v1168, 0.0
        %v1180 = vmax.f32 %v1171, 0.0
        %v1181 = vmax.f32 %v1174, 0.0
        %v1182 = vmax.f32 %v1177, 0.0
        %v1183 = vld [vmem:[%s4] sm:$0xff]
        %v1184 = vld [vmem:[%s4 + $0x8] sm:$0xff]
        %v1185 = vld [vmem:[%s4 + $0x10] sm:$0xff]
        %v1186 = vld [vmem:[%s4 + $0x18] sm:$0xff]
        %v1187 = vld [vmem:[%s4 + $0x20] sm:$0xff]
        %v1188 = vld [vmem:[%s4 + $0x28] sm:$0xff]
        %v1189 = vld [vmem:[%s4 + $0x30] sm:$0xff]
        %v1190 = vld [vmem:[%s4 + $0x38] sm:$0xff]
        %v1191 = vld [vmem:[%s4 + $0x40] sm:$0xff]
        %v1192 = vld [vmem:[%s4 + $0x48] sm:$0xff]
        %v1193 = vld [vmem:[%s4 + $0x50] sm:$0xff]
        %v1194 = vld [vmem:[%s4 + $0x58] sm:$0xff]
        %v1195 = vld [vmem:[%s4 + $0x60] sm:$0xff]
        %v1196 = vld [vmem:[%s4 + $0x68] sm:$0xff]
        %v1197 = vld [vmem:[%s4 + $0x70] sm:$0xff]
        %v1198 = vld [vmem:[%s4 + $0x78] sm:$0xff]
        %v1199 = vld [vmem:[%s13 + $0x3] ss:$0 sm:$0xff]
        %1200 = vmatpush.msra.mxu0 %v1198
        %1201 = vmatpush.msra.mxu0 %v1197
        %1202 = vmatpush.msra.mxu0 %v1196
        %1203 = vmatpush.msra.mxu0 %v1195
        %1204 = vmatpush.msra.mxu0 %v1194
        %1205 = vmatpush.msra.mxu0 %v1193
        %1206 = vmatpush.msra.mxu0 %v1192
        %1207 = vmatpush.msra.mxu0 %v1191
        %1208 = vmatpush.msra.mxu0 %v1190
        %1209 = vmatpush.msra.mxu0 %v1189
        %1210 = vmatpush.msra.mxu0 %v1188
        %1211 = vmatpush.msra.mxu0 %v1187
        %1212 = vmatpush.msra.mxu0 %v1186
        %1213 = vmatpush.msra.mxu0 %v1185
        %1214 = vmatpush.msra.mxu0 %v1184
        %1215 = vmatpush.msra.mxu0 %v1183
        %1216 = vmatmul.f32.gmra.mxu0 %v1179
        %v1217 = vpop.f32.mrf.mxu0
        %v1218 = vadd.f32 %v1199, %v1217
        %1219 = vmatmul.f32.gmra.mxu0 %v1180
        %v1220 = vpop.f32.mrf.mxu0
        %v1221 = vadd.f32 %v1199, %v1220
        %1222 = vmatmul.f32.gmra.mxu0 %v1181
        %v1223 = vpop.f32.mrf.mxu0
        %v1224 = vadd.f32 %v1199, %v1223
        %1225 = vmatmul.f32.gmra.mxu0 %v1182
        %v1226 = vpop.f32.mrf.mxu0
        %v1227 = vadd.f32 %v1199, %v1226
        %1228 = vdwg.mxu0
        %v1229 = vmax.f32 %v1218, 0.0
        %v1230 = vmax.f32 %v1221, 0.0
        %v1231 = vmax.f32 %v1224, 0.0
        %v1232 = vmax.f32 %v1227, 0.0
        %v1233 = vld [vmem:[%s5] sm:$0xff]
        %v1234 = vld [vmem:[%s5 + $0x8] sm:$0xff]
        %v1235 = vld [vmem:[%s5 + $0x10] sm:$0xff]
        %v1236 = vld [vmem:[%s5 + $0x18] sm:$0xff]
        %v1237 = vld [vmem:[%s5 + $0x20] sm:$0xff]
        %v1238 = vld [vmem:[%s5 + $0x28] sm:$0xff]
        %v1239 = vld [vmem:[%s5 + $0x30] sm:$0xff]
        %v1240 = vld [vmem:[%s5 + $0x38] sm:$0xff]
        %v1241 = vld [vmem:[%s13 + $0x4] ss:$0 sm:$0xff]
        %vm1242 = vcmask 523264
        %v1244 = vsel %vm1242, %v1229, 0
        %v1247 = vsel %vm1242, %v1230, 0
        %v1250 = vsel %vm1242, %v1231, 0
        %v1253 = vsel %vm1242, %v1232, 0
        %1255 = vmatpush.msra.mxu0 0.0
        %1256 = vmatpush.msra.mxu0 0.0
        %1257 = vmatpush.msra.mxu0 0.0
        %1258 = vmatpush.msra.mxu0 0.0
        %1259 = vmatpush.msra.mxu0 0.0
        %1260 = vmatpush.msra.mxu0 0.0
        %1261 = vmatpush.msra.mxu0 0.0
        %1262 = vmatpush.msra.mxu0 0.0
        %1263 = vmatpush.msra.mxu0 %v1240
        %1264 = vmatpush.msra.mxu0 %v1239
        %1265 = vmatpush.msra.mxu0 %v1238
        %1266 = vmatpush.msra.mxu0 %v1237
        %1267 = vmatpush.msra.mxu0 %v1236
        %1268 = vmatpush.msra.mxu0 %v1235
        %1269 = vmatpush.msra.mxu0 %v1234
        %1270 = vmatpush.msra.mxu0 %v1233
        %1271 = vmatmul.f32.gmra.mxu0 %v1244
        %v1272 = vpop.f32.mrf.mxu0
        %v1273 = vadd.f32 %v1241, %v1272
        %1274 = vmatmul.f32.gmra.mxu0 %v1247
        %v1275 = vpop.f32.mrf.mxu0
        %v1276 = vadd.f32 %v1241, %v1275
        %1277 = vmatmul.f32.gmra.mxu0 %v1250
        %v1278 = vpop.f32.mrf.mxu0
        %v1279 = vadd.f32 %v1241, %v1278
        %1280 = vmatmul.f32.gmra.mxu0 %v1253
        %v1281 = vpop.f32.mrf.mxu0
        %v1282 = vadd.f32 %v1241, %v1281
        %1283 = vdwg.mxu0
        %v1284 = vmax.f32 %v1273, 0.0
        %v1285 = vmax.f32 %v1276, 0.0
        %v1286 = vmax.f32 %v1279, 0.0
        %v1287 = vmax.f32 %v1282, 0.0
        %v1288 = vld [vmem:[%s6] sm:$0xff]
        %v1289 = vld [vmem:[%s6 + $0x8] sm:$0xff]
        %v1290 = vld [vmem:[%s6 + $0x10] sm:$0xff]
        %v1291 = vld [vmem:[%s6 + $0x18] sm:$0xff]
        %v1292 = vld [vmem:[%s13 + $0x5] ss:$0 sm:$0xff]
        %vm1293 = vcmask 261120
        %v1295 = vsel %vm1293, %v1284, 0
        %v1298 = vsel %vm1293, %v1285, 0
        %v1301 = vsel %vm1293, %v1286, 0
        %v1304 = vsel %vm1293, %v1287, 0
        %1306 = vmatpush.msra.mxu0 0.0
        %1307 = vmatpush.msra.mxu0 0.0
        %1308 = vmatpush.msra.mxu0 0.0
        %1309 = vmatpush.msra.mxu0 0.0
        %1310 = vmatpush.msra.mxu0 0.0
        %1311 = vmatpush.msra.mxu0 0.0
        %1312 = vmatpush.msra.mxu0 0.0
        %1313 = vmatpush.msra.mxu0 0.0
        %1314 = vmatpush.msra.mxu0 0.0
        %1315 = vmatpush.msra.mxu0 0.0
        %1316 = vmatpush.msra.mxu0 0.0
        %1317 = vmatpush.msra.mxu0 0.0
        %1318 = vmatpush.msra.mxu0 %v1291
        %1319 = vmatpush.msra.mxu0 %v1290
        %1320 = vmatpush.msra.mxu0 %v1289
        %1321 = vmatpush.msra.mxu0 %v1288
        %1322 = vmatmul.f32.gmra.mxu0 %v1295
        %v1323 = vpop.f32.mrf.mxu0
        %v1324 = vadd.f32 %v1292, %v1323
        %1325 = vmatmul.f32.gmra.mxu0 %v1298
        %v1326 = vpop.f32.mrf.mxu0
        %v1327 = vadd.f32 %v1292, %v1326
        %1328 = vmatmul.f32.gmra.mxu0 %v1301
        %v1329 = vpop.f32.mrf.mxu0
        %v1330 = vadd.f32 %v1292, %v1329
        %1331 = vmatmul.f32.gmra.mxu0 %v1304
        %v1332 = vpop.f32.mrf.mxu0
        %v1333 = vadd.f32 %v1292, %v1332
        %1334 = vdwg.mxu0
        %v1335 = vld [vmem:[%s7] sm:$0xff]
        %v1336 = vld [vmem:[%s13 + $0x6] ss:$0 sm:$0xff]
        %vm1337 = vcmask 64512
        %v1339 = vsel %vm1337, %v1324, 0
        %v1342 = vsel %vm1337, %v1327, 0
        %v1345 = vsel %vm1337, %v1330, 0
        %v1348 = vsel %vm1337, %v1333, 0
        %1350 = vmatpush.msra.mxu0 0.0
        %1351 = vmatpush.msra.mxu0 0.0
        %1352 = vmatpush.msra.mxu0 0.0
        %1353 = vmatpush.msra.mxu0 0.0
        %1354 = vmatpush.msra.mxu0 0.0
        %1355 = vmatpush.msra.mxu0 0.0
        %1356 = vmatpush.msra.mxu0 0.0
        %1357 = vmatpush.msra.mxu0 0.0
        %1358 = vmatpush.msra.mxu0 0.0
        %1359 = vmatpush.msra.mxu0 0.0
        %1360 = vmatpush.msra.mxu0 0.0
        %1361 = vmatpush.msra.mxu0 0.0
        %1362 = vmatpush.msra.mxu0 0.0
        %1363 = vmatpush.msra.mxu0 0.0
        %1364 = vmatpush.msra.mxu0 0.0
        %1365 = vmatpush.msra.mxu0 %v1335
        %1366 = vmatmul.f32.gmra.mxu0 %v1339
        %v1367 = vpop.f32.mrf.mxu0
        %v1368 = vadd.f32 %v1336, %v1367
        %1369 = vmatmul.f32.gmra.mxu0 %v1342
        %v1370 = vpop.f32.mrf.mxu0
        %v1371 = vadd.f32 %v1336, %v1370
        %1372 = vmatmul.f32.gmra.mxu0 %v1345
        %v1373 = vpop.f32.mrf.mxu0
        %v1374 = vadd.f32 %v1336, %v1373
        %1375 = vmatmul.f32.gmra.mxu0 %v1348
        %v1376 = vpop.f32.mrf.mxu0
        %v1377 = vadd.f32 %v1336, %v1376
        %1378 = vdwg.mxu0
        %v1379 = vmax.f32 %v1368, 0.0
        %v1380 = vmax.f32 %v1371, 0.0
        %v1381 = vmax.f32 %v1374, 0.0
        %v1382 = vmax.f32 %v1377, 0.0
        %v1383 = vld [vmem:[%s8] sm:$0xff]
        %v1384 = vld [vmem:[%s8 + $0x8] sm:$0xff]
        %v1385 = vld [vmem:[%s8 + $0x10] sm:$0xff]
        %v1386 = vld [vmem:[%s8 + $0x18] sm:$0xff]
        %v1387 = vld [vmem:[%s13 + $0x7] ss:$0 sm:$0xff]
        %v1389 = vsel %vm1293, %v1379, 0
        %v1392 = vsel %vm1293, %v1380, 0
        %v1395 = vsel %vm1293, %v1381, 0
        %v1398 = vsel %vm1293, %v1382, 0
        %1400 = vmatpush.msra.mxu0 0.0
        %1401 = vmatpush.msra.mxu0 0.0
        %1402 = vmatpush.msra.mxu0 0.0
        %1403 = vmatpush.msra.mxu0 0.0
        %1404 = vmatpush.msra.mxu0 0.0
        %1405 = vmatpush.msra.mxu0 0.0
        %1406 = vmatpush.msra.mxu0 0.0
        %1407 = vmatpush.msra.mxu0 0.0
        %1408 = vmatpush.msra.mxu0 0.0
        %1409 = vmatpush.msra.mxu0 0.0
        %1410 = vmatpush.msra.mxu0 0.0
        %1411 = vmatpush.msra.mxu0 0.0
        %1412 = vmatpush.msra.mxu0 %v1386
        %1413 = vmatpush.msra.mxu0 %v1385
        %1414 = vmatpush.msra.mxu0 %v1384
        %1415 = vmatpush.msra.mxu0 %v1383
        %1416 = vmatmul.f32.gmra.mxu0 %v1389
        %v1417 = vpop.f32.mrf.mxu0
        %v1418 = vadd.f32 %v1387, %v1417
        %1419 = vmatmul.f32.gmra.mxu0 %v1392
        %v1420 = vpop.f32.mrf.mxu0
        %v1421 = vadd.f32 %v1387, %v1420
        %1422 = vmatmul.f32.gmra.mxu0 %v1395
        %v1423 = vpop.f32.mrf.mxu0
        %v1424 = vadd.f32 %v1387, %v1423
        %1425 = vmatmul.f32.gmra.mxu0 %v1398
        %v1426 = vpop.f32.mrf.mxu0
        %v1427 = vadd.f32 %v1387, %v1426
        %1428 = vdwg.mxu0
        %v1429 = vmax.f32 %v1418, 0.0
        %v1430 = vmax.f32 %v1421, 0.0
        %v1431 = vmax.f32 %v1424, 0.0
        %v1432 = vmax.f32 %v1427, 0.0
        %v1433 = vld [vmem:[%s9] sm:$0xff]
        %v1434 = vld [vmem:[%s9 + $0x8] sm:$0xff]
        %v1435 = vld [vmem:[%s9 + $0x10] sm:$0xff]
        %v1436 = vld [vmem:[%s9 + $0x18] sm:$0xff]
        %v1437 = vld [vmem:[%s9 + $0x20] sm:$0xff]
        %v1438 = vld [vmem:[%s9 + $0x28] sm:$0xff]
        %v1439 = vld [vmem:[%s9 + $0x30] sm:$0xff]
        %v1440 = vld [vmem:[%s9 + $0x38] sm:$0xff]
        %v1441 = vld [vmem:[%s13 + $0x20] ss:$0 sm:$0xff]
        %v1443 = vsel %vm1242, %v1429, 0
        %v1446 = vsel %vm1242, %v1430, 0
        %v1449 = vsel %vm1242, %v1431, 0
        %v1452 = vsel %vm1242, %v1432, 0
        %1454 = vmatpush.msra.mxu0 0.0
        %1455 = vmatpush.msra.mxu0 0.0
        %1456 = vmatpush.msra.mxu0 0.0
        %1457 = vmatpush.msra.mxu0 0.0
        %1458 = vmatpush.msra.mxu0 0.0
        %1459 = vmatpush.msra.mxu0 0.0
        %1460 = vmatpush.msra.mxu0 0.0
        %1461 = vmatpush.msra.mxu0 0.0
        %1462 = vmatpush.msra.mxu0 %v1440
        %1463 = vmatpush.msra.mxu0 %v1439
        %1464 = vmatpush.msra.mxu0 %v1438
        %1465 = vmatpush.msra.mxu0 %v1437
        %1466 = vmatpush.msra.mxu0 %v1436
        %1467 = vmatpush.msra.mxu0 %v1435
        %1468 = vmatpush.msra.mxu0 %v1434
        %1469 = vmatpush.msra.mxu0 %v1433
        %1470 = vmatmul.f32.gmra.mxu0 %v1443
        %v1471 = vpop.f32.mrf.mxu0
        %v1472 = vadd.f32 %v1441, %v1471
        %1473 = vmatmul.f32.gmra.mxu0 %v1446
        %v1474 = vpop.f32.mrf.mxu0
        %v1475 = vadd.f32 %v1441, %v1474
        %1476 = vmatmul.f32.gmra.mxu0 %v1449
        %v1477 = vpop.f32.mrf.mxu0
        %v1478 = vadd.f32 %v1441, %v1477
        %1479 = vmatmul.f32.gmra.mxu0 %v1452
        %v1480 = vpop.f32.mrf.mxu0
        %v1481 = vadd.f32 %v1441, %v1480
        %1482 = vdwg.mxu0
        %v1483 = vmax.f32 %v1472, 0.0
        %v1484 = vmax.f32 %v1475, 0.0
        %v1485 = vmax.f32 %v1478, 0.0
        %v1486 = vmax.f32 %v1481, 0.0
        %v1487 = vld [vmem:[%s10] sm:$0xff]
        %v1488 = vld [vmem:[%s10 + $0x8] sm:$0xff]
        %v1489 = vld [vmem:[%s10 + $0x10] sm:$0xff]
        %v1490 = vld [vmem:[%s10 + $0x18] sm:$0xff]
        %v1491 = vld [vmem:[%s10 + $0x20] sm:$0xff]
        %v1492 = vld [vmem:[%s10 + $0x28] sm:$0xff]
        %v1493 = vld [vmem:[%s10 + $0x30] sm:$0xff]
        %v1494 = vld [vmem:[%s10 + $0x38] sm:$0xff]
        %v1495 = vld [vmem:[%s10 + $0x40] sm:$0xff]
        %v1496 = vld [vmem:[%s10 + $0x48] sm:$0xff]
        %v1497 = vld [vmem:[%s10 + $0x50] sm:$0xff]
        %v1498 = vld [vmem:[%s10 + $0x58] sm:$0xff]
        %v1499 = vld [vmem:[%s10 + $0x60] sm:$0xff]
        %v1500 = vld [vmem:[%s10 + $0x68] sm:$0xff]
        %v1501 = vld [vmem:[%s10 + $0x70] sm:$0xff]
        %v1502 = vld [vmem:[%s10 + $0x78] sm:$0xff]
        %v1503 = vld [vmem:[%s10 + $0x80] sm:$0xff]
        %v1504 = vld [vmem:[%s10 + $0x88] sm:$0xff]
        %v1505 = vld [vmem:[%s10 + $0x90] sm:$0xff]
        %v1506 = vld [vmem:[%s10 + $0x98] sm:$0xff]
        %v1507 = vld [vmem:[%s10 + $0xa0] sm:$0xff]
        %v1508 = vld [vmem:[%s10 + $0xa8] sm:$0xff]
        %v1509 = vld [vmem:[%s10 + $0xb0] sm:$0xff]
        %v1510 = vld [vmem:[%s10 + $0xb8] sm:$0xff]
        %v1511 = vld [vmem:[%s10 + $0xc0] sm:$0xff]
        %v1512 = vld [vmem:[%s10 + $0xc8] sm:$0xff]
        %v1513 = vld [vmem:[%s10 + $0xd0] sm:$0xff]
        %v1514 = vld [vmem:[%s10 + $0xd8] sm:$0xff]
        %v1515 = vld [vmem:[%s10 + $0xe0] sm:$0xff]
        %v1516 = vld [vmem:[%s10 + $0xe8] sm:$0xff]
        %v1517 = vld [vmem:[%s10 + $0xf0] sm:$0xff]
        %v1518 = vld [vmem:[%s10 + $0xf8] sm:$0xff]
        %s1519 = scalar_lea.vmem %s13, 33
        %v1520 = vld [vmem:[%s1519] ss:$8 sm:$0x3]
        %v1522 = vperm.slane %v1520, 0
        %v1523 = vperm.slane %v1520, 1
        %1526 = vmatpush.msra.mxu0 %v1517
        %1527 = vmatpush.msra.mxu0 %v1515
        %1528 = vmatpush.msra.mxu0 %v1513
        %1529 = vmatpush.msra.mxu0 %v1511
        %1530 = vmatpush.msra.mxu0 %v1509
        %1531 = vmatpush.msra.mxu0 %v1507
        %1532 = vmatpush.msra.mxu0 %v1505
        %1533 = vmatpush.msra.mxu0 %v1503
        %1534 = vmatpush.msra.mxu0 %v1501
        %1535 = vmatpush.msra.mxu0 %v1499
        %1536 = vmatpush.msra.mxu0 %v1497
        %1537 = vmatpush.msra.mxu0 %v1495
        %1538 = vmatpush.msra.mxu0 %v1493
        %1539 = vmatpush.msra.mxu0 %v1491
        %1540 = vmatpush.msra.mxu0 %v1489
        %1541 = vmatpush.msra.mxu0 %v1487
        %1542 = vmatmul.f32.gmra.mxu0 %v1483
        %v1543 = vpop.f32.mrf.mxu0
        %v1544 = vadd.f32 %v1522, %v1543
        %1545 = vmatmul.f32.gmra.mxu0 %v1484
        %v1546 = vpop.f32.mrf.mxu0
        %v1547 = vadd.f32 %v1522, %v1546
        %1548 = vmatmul.f32.gmra.mxu0 %v1485
        %v1549 = vpop.f32.mrf.mxu0
        %v1550 = vadd.f32 %v1522, %v1549
        %1551 = vmatmul.f32.gmra.mxu0 %v1486
        %v1552 = vpop.f32.mrf.mxu0
        %v1553 = vadd.f32 %v1522, %v1552
        %1554 = vdwg.mxu0
        %1555 = vmatpush.msra.mxu0 %v1518
        %1556 = vmatpush.msra.mxu0 %v1516
        %1557 = vmatpush.msra.mxu0 %v1514
        %1558 = vmatpush.msra.mxu0 %v1512
        %1559 = vmatpush.msra.mxu0 %v1510
        %1560 = vmatpush.msra.mxu0 %v1508
        %1561 = vmatpush.msra.mxu0 %v1506
        %1562 = vmatpush.msra.mxu0 %v1504
        %1563 = vmatpush.msra.mxu0 %v1502
        %1564 = vmatpush.msra.mxu0 %v1500
        %1565 = vmatpush.msra.mxu0 %v1498
        %1566 = vmatpush.msra.mxu0 %v1496
        %1567 = vmatpush.msra.mxu0 %v1494
        %1568 = vmatpush.msra.mxu0 %v1492
        %1569 = vmatpush.msra.mxu0 %v1490
        %1570 = vmatpush.msra.mxu0 %v1488
        %1571 = vmatmul.f32.gmra.mxu0 %v1483
        %v1572 = vpop.f32.mrf.mxu0
        %v1573 = vadd.f32 %v1523, %v1572
        %1574 = vmatmul.f32.gmra.mxu0 %v1484
        %v1575 = vpop.f32.mrf.mxu0
        %v1576 = vadd.f32 %v1523, %v1575
        %1577 = vmatmul.f32.gmra.mxu0 %v1485
        %v1578 = vpop.f32.mrf.mxu0
        %v1579 = vadd.f32 %v1523, %v1578
        %1580 = vmatmul.f32.gmra.mxu0 %v1486
        %v1581 = vpop.f32.mrf.mxu0
        %v1582 = vadd.f32 %v1523, %v1581
        %1583 = vdwg.mxu0
        %v1584 = vmax.f32 %v1544, 0.0
        %v1585 = vmax.f32 %v1573, 0.0
        %v1586 = vmax.f32 %v1547, 0.0
        %v1587 = vmax.f32 %v1576, 0.0
        %v1588 = vmax.f32 %v1550, 0.0
        %v1589 = vmax.f32 %v1579, 0.0
        %v1590 = vmax.f32 %v1553, 0.0
        %v1591 = vmax.f32 %v1582, 0.0
        %v1592 = vld [vmem:[#allocation4] sm:$0xff]
        %v1593 = vld [vmem:[#allocation4 + $0x8] sm:$0xff]
        %v1594 = vld [vmem:[#allocation4 + $0x10] sm:$0xff]
        %v1595 = vld [vmem:[#allocation4 + $0x18] sm:$0xff]
        %v1596 = vld [vmem:[#allocation4 + $0x20] sm:$0xff]
        %v1597 = vld [vmem:[#allocation4 + $0x28] sm:$0xff]
        %v1598 = vld [vmem:[#allocation4 + $0x30] sm:$0xff]
        %v1599 = vld [vmem:[#allocation4 + $0x38] sm:$0xff]
        %v1600 = vld [vmem:[#allocation4 + $0x40] sm:$0xff]
        %v1601 = vld [vmem:[#allocation4 + $0x48] sm:$0xff]
        %v1602 = vld [vmem:[#allocation4 + $0x50] sm:$0xff]
        %v1603 = vld [vmem:[#allocation4 + $0x58] sm:$0xff]
        %v1604 = vld [vmem:[#allocation4 + $0x60] sm:$0xff]
        %v1605 = vld [vmem:[#allocation4 + $0x68] sm:$0xff]
        %v1606 = vld [vmem:[#allocation4 + $0x70] sm:$0xff]
        %v1607 = vld [vmem:[#allocation4 + $0x78] sm:$0xff]
        %v1608 = vld [vmem:[#allocation4 + $0x80] sm:$0xff]
        %v1609 = vld [vmem:[#allocation4 + $0x88] sm:$0xff]
        %v1610 = vld [vmem:[#allocation4 + $0x90] sm:$0xff]
        %v1611 = vld [vmem:[#allocation4 + $0x98] sm:$0xff]
        %v1612 = vld [vmem:[#allocation4 + $0xa0] sm:$0xff]
        %v1613 = vld [vmem:[#allocation4 + $0xa8] sm:$0xff]
        %v1614 = vld [vmem:[#allocation4 + $0xb0] sm:$0xff]
        %v1615 = vld [vmem:[#allocation4 + $0xb8] sm:$0xff]
        %v1616 = vld [vmem:[#allocation4 + $0xc0] sm:$0xff]
        %v1617 = vld [vmem:[#allocation4 + $0xc8] sm:$0xff]
        %v1618 = vld [vmem:[#allocation4 + $0xd0] sm:$0xff]
        %v1619 = vld [vmem:[#allocation4 + $0xd8] sm:$0xff]
        %v1620 = vld [vmem:[#allocation4 + $0xe0] sm:$0xff]
        %v1621 = vld [vmem:[#allocation4 + $0xe8] sm:$0xff]
        %v1622 = vld [vmem:[#allocation4 + $0xf0] sm:$0xff]
        %v1623 = vld [vmem:[#allocation4 + $0xf8] sm:$0xff]
        %v1624 = vld [vmem:[#allocation4 + $0x100] sm:$0xff]
        %v1625 = vld [vmem:[#allocation4 + $0x108] sm:$0xff]
        %v1626 = vld [vmem:[#allocation4 + $0x110] sm:$0xff]
        %v1627 = vld [vmem:[#allocation4 + $0x118] sm:$0xff]
        %v1628 = vld [vmem:[#allocation4 + $0x120] sm:$0xff]
        %v1629 = vld [vmem:[#allocation4 + $0x128] sm:$0xff]
        %v1630 = vld [vmem:[#allocation4 + $0x130] sm:$0xff]
        %v1631 = vld [vmem:[#allocation4 + $0x138] sm:$0xff]
        %v1632 = vld [vmem:[#allocation4 + $0x140] sm:$0xff]
        %v1633 = vld [vmem:[#allocation4 + $0x148] sm:$0xff]
        %v1634 = vld [vmem:[#allocation4 + $0x150] sm:$0xff]
        %v1635 = vld [vmem:[#allocation4 + $0x158] sm:$0xff]
        %v1636 = vld [vmem:[#allocation4 + $0x160] sm:$0xff]
        %v1637 = vld [vmem:[#allocation4 + $0x168] sm:$0xff]
        %v1638 = vld [vmem:[#allocation4 + $0x170] sm:$0xff]
        %v1639 = vld [vmem:[#allocation4 + $0x178] sm:$0xff]
        %v1640 = vld [vmem:[#allocation4 + $0x180] sm:$0xff]
        %v1641 = vld [vmem:[#allocation4 + $0x188] sm:$0xff]
        %v1642 = vld [vmem:[#allocation4 + $0x190] sm:$0xff]
        %v1643 = vld [vmem:[#allocation4 + $0x198] sm:$0xff]
        %v1644 = vld [vmem:[#allocation4 + $0x1a0] sm:$0xff]
        %v1645 = vld [vmem:[#allocation4 + $0x1a8] sm:$0xff]
        %v1646 = vld [vmem:[#allocation4 + $0x1b0] sm:$0xff]
        %v1647 = vld [vmem:[#allocation4 + $0x1b8] sm:$0xff]
        %v1648 = vld [vmem:[#allocation4 + $0x1c0] sm:$0xff]
        %v1649 = vld [vmem:[#allocation4 + $0x1c8] sm:$0xff]
        %v1650 = vld [vmem:[#allocation4 + $0x1d0] sm:$0xff]
        %v1651 = vld [vmem:[#allocation4 + $0x1d8] sm:$0xff]
        %v1652 = vld [vmem:[#allocation4 + $0x1e0] sm:$0xff]
        %v1653 = vld [vmem:[#allocation4 + $0x1e8] sm:$0xff]
        %v1654 = vld [vmem:[#allocation4 + $0x1f0] sm:$0xff]
        %v1655 = vld [vmem:[#allocation4 + $0x1f8] sm:$0xff]
        %v1656 = vld [vmem:[#allocation4 + $0x200] sm:$0xff]
        %v1657 = vld [vmem:[#allocation4 + $0x208] sm:$0xff]
        %v1658 = vld [vmem:[#allocation4 + $0x210] sm:$0xff]
        %v1659 = vld [vmem:[#allocation4 + $0x218] sm:$0xff]
        %v1660 = vld [vmem:[#allocation4 + $0x220] sm:$0xff]
        %v1661 = vld [vmem:[#allocation4 + $0x228] sm:$0xff]
        %v1662 = vld [vmem:[#allocation4 + $0x230] sm:$0xff]
        %v1663 = vld [vmem:[#allocation4 + $0x238] sm:$0xff]
        %v1664 = vld [vmem:[#allocation4 + $0x240] sm:$0xff]
        %v1665 = vld [vmem:[#allocation4 + $0x248] sm:$0xff]
        %v1666 = vld [vmem:[#allocation4 + $0x250] sm:$0xff]
        %v1667 = vld [vmem:[#allocation4 + $0x258] sm:$0xff]
        %v1668 = vld [vmem:[#allocation4 + $0x260] sm:$0xff]
        %v1669 = vld [vmem:[#allocation4 + $0x268] sm:$0xff]
        %v1670 = vld [vmem:[#allocation4 + $0x270] sm:$0xff]
        %v1671 = vld [vmem:[#allocation4 + $0x278] sm:$0xff]
        %v1672 = vld [vmem:[#allocation4 + $0x280] sm:$0xff]
        %v1673 = vld [vmem:[#allocation4 + $0x288] sm:$0xff]
        %v1674 = vld [vmem:[#allocation4 + $0x290] sm:$0xff]
        %v1675 = vld [vmem:[#allocation4 + $0x298] sm:$0xff]
        %v1676 = vld [vmem:[#allocation4 + $0x2a0] sm:$0xff]
        %v1677 = vld [vmem:[#allocation4 + $0x2a8] sm:$0xff]
        %v1678 = vld [vmem:[#allocation4 + $0x2b0] sm:$0xff]
        %v1679 = vld [vmem:[#allocation4 + $0x2b8] sm:$0xff]
        %v1680 = vld [vmem:[#allocation4 + $0x2c0] sm:$0xff]
        %v1681 = vld [vmem:[#allocation4 + $0x2c8] sm:$0xff]
        %v1682 = vld [vmem:[#allocation4 + $0x2d0] sm:$0xff]
        %v1683 = vld [vmem:[#allocation4 + $0x2d8] sm:$0xff]
        %v1684 = vld [vmem:[#allocation4 + $0x2e0] sm:$0xff]
        %v1685 = vld [vmem:[#allocation4 + $0x2e8] sm:$0xff]
        %v1686 = vld [vmem:[#allocation4 + $0x2f0] sm:$0xff]
        %v1687 = vld [vmem:[#allocation4 + $0x2f8] sm:$0xff]
        %v1688 = vld [vmem:[#allocation4 + $0x300] sm:$0xff]
        %v1689 = vld [vmem:[#allocation4 + $0x308] sm:$0xff]
        %v1690 = vld [vmem:[#allocation4 + $0x310] sm:$0xff]
        %v1691 = vld [vmem:[#allocation4 + $0x318] sm:$0xff]
        %v1692 = vld [vmem:[#allocation4 + $0x320] sm:$0xff]
        %v1693 = vld [vmem:[#allocation4 + $0x328] sm:$0xff]
        %v1694 = vld [vmem:[#allocation4 + $0x330] sm:$0xff]
        %v1695 = vld [vmem:[#allocation4 + $0x338] sm:$0xff]
        %v1696 = vld [vmem:[#allocation4 + $0x340] sm:$0xff]
        %v1697 = vld [vmem:[#allocation4 + $0x348] sm:$0xff]
        %v1698 = vld [vmem:[#allocation4 + $0x350] sm:$0xff]
        %v1699 = vld [vmem:[#allocation4 + $0x358] sm:$0xff]
        %v1700 = vld [vmem:[#allocation4 + $0x360] sm:$0xff]
        %v1701 = vld [vmem:[#allocation4 + $0x368] sm:$0xff]
        %v1702 = vld [vmem:[#allocation4 + $0x370] sm:$0xff]
        %v1703 = vld [vmem:[#allocation4 + $0x378] sm:$0xff]
        %v1704 = vld [vmem:[#allocation4 + $0x380] sm:$0xff]
        %v1705 = vld [vmem:[#allocation4 + $0x388] sm:$0xff]
        %v1706 = vld [vmem:[#allocation4 + $0x390] sm:$0xff]
        %v1707 = vld [vmem:[#allocation4 + $0x398] sm:$0xff]
        %v1708 = vld [vmem:[#allocation4 + $0x3a0] sm:$0xff]
        %v1709 = vld [vmem:[#allocation4 + $0x3a8] sm:$0xff]
        %v1710 = vld [vmem:[#allocation4 + $0x3b0] sm:$0xff]
        %v1711 = vld [vmem:[#allocation4 + $0x3b8] sm:$0xff]
        %v1712 = vld [vmem:[#allocation4 + $0x3c0] sm:$0xff]
        %v1713 = vld [vmem:[#allocation4 + $0x3c8] sm:$0xff]
        %v1714 = vld [vmem:[#allocation4 + $0x3d0] sm:$0xff]
        %v1715 = vld [vmem:[#allocation4 + $0x3d8] sm:$0xff]
        %v1716 = vld [vmem:[#allocation4 + $0x3e0] sm:$0xff]
        %v1717 = vld [vmem:[#allocation4 + $0x3e8] sm:$0xff]
        %v1718 = vld [vmem:[#allocation4 + $0x3f0] sm:$0xff]
        %v1719 = vld [vmem:[#allocation4 + $0x3f8] sm:$0xff]
        %s1720 = scalar_lea.vmem %s13, 34
        %v1721 = vld [vmem:[%s1720] ss:$8 sm:$0xf]
        %v1723 = vperm.slane %v1721, 0
        %v1724 = vperm.slane %v1721, 1
        %v1725 = vperm.slane %v1721, 2
        %v1726 = vperm.slane %v1721, 3
        %1731 = vmatpush.msra.mxu0 %v1652
        %1732 = vmatpush.msra.mxu0 %v1648
        %1733 = vmatpush.msra.mxu0 %v1644
        %1734 = vmatpush.msra.mxu0 %v1640
        %1735 = vmatpush.msra.mxu0 %v1636
        %1736 = vmatpush.msra.mxu0 %v1632
        %1737 = vmatpush.msra.mxu0 %v1628
        %1738 = vmatpush.msra.mxu0 %v1624
        %1739 = vmatpush.msra.mxu0 %v1620
        %1740 = vmatpush.msra.mxu0 %v1616
        %1741 = vmatpush.msra.mxu0 %v1612
        %1742 = vmatpush.msra.mxu0 %v1608
        %1743 = vmatpush.msra.mxu0 %v1604
        %1744 = vmatpush.msra.mxu0 %v1600
        %1745 = vmatpush.msra.mxu0 %v1596
        %1746 = vmatpush.msra.mxu0 %v1592
        %1747 = vmatmul.f32.gmra.mxu0 %v1584
        %v1748 = vpop.f32.mrf.mxu0
        %v1749 = vadd.f32 %v1723, %v1748
        %1750 = vmatmul.f32.gmra.mxu0 %v1586
        %v1751 = vpop.f32.mrf.mxu0
        %v1752 = vadd.f32 %v1723, %v1751
        %1753 = vmatmul.f32.gmra.mxu0 %v1588
        %v1754 = vpop.f32.mrf.mxu0
        %v1755 = vadd.f32 %v1723, %v1754
        %1756 = vmatmul.f32.gmra.mxu0 %v1590
        %v1757 = vpop.f32.mrf.mxu0
        %v1758 = vadd.f32 %v1723, %v1757
        %1759 = vdwg.mxu0
        %1760 = vmatpush.msra.mxu0 %v1716
        %1761 = vmatpush.msra.mxu0 %v1712
        %1762 = vmatpush.msra.mxu0 %v1708
        %1763 = vmatpush.msra.mxu0 %v1704
        %1764 = vmatpush.msra.mxu0 %v1700
        %1765 = vmatpush.msra.mxu0 %v1696
        %1766 = vmatpush.msra.mxu0 %v1692
        %1767 = vmatpush.msra.mxu0 %v1688
        %1768 = vmatpush.msra.mxu0 %v1684
        %1769 = vmatpush.msra.mxu0 %v1680
        %1770 = vmatpush.msra.mxu0 %v1676
        %1771 = vmatpush.msra.mxu0 %v1672
        %1772 = vmatpush.msra.mxu0 %v1668
        %1773 = vmatpush.msra.mxu0 %v1664
        %1774 = vmatpush.msra.mxu0 %v1660
        %1775 = vmatpush.msra.mxu0 %v1656
        %1776 = vmatmul.f32.gmra.mxu0 %v1585
        %v1777 = vpop.f32.mrf.mxu0
        %v1778 = vadd.f32 %v1749, %v1777
        %1779 = vmatmul.f32.gmra.mxu0 %v1587
        %v1780 = vpop.f32.mrf.mxu0
        %v1781 = vadd.f32 %v1752, %v1780
        %1782 = vmatmul.f32.gmra.mxu0 %v1589
        %v1783 = vpop.f32.mrf.mxu0
        %v1784 = vadd.f32 %v1755, %v1783
        %1785 = vmatmul.f32.gmra.mxu0 %v1591
        %v1786 = vpop.f32.mrf.mxu0
        %v1787 = vadd.f32 %v1758, %v1786
        %1788 = vdwg.mxu0
        %1789 = vmatpush.msra.mxu0 %v1653
        %1790 = vmatpush.msra.mxu0 %v1649
        %1791 = vmatpush.msra.mxu0 %v1645
        %1792 = vmatpush.msra.mxu0 %v1641
        %1793 = vmatpush.msra.mxu0 %v1637
        %1794 = vmatpush.msra.mxu0 %v1633
        %1795 = vmatpush.msra.mxu0 %v1629
        %1796 = vmatpush.msra.mxu0 %v1625
        %1797 = vmatpush.msra.mxu0 %v1621
        %1798 = vmatpush.msra.mxu0 %v1617
        %1799 = vmatpush.msra.mxu0 %v1613
        %1800 = vmatpush.msra.mxu0 %v1609
        %1801 = vmatpush.msra.mxu0 %v1605
        %1802 = vmatpush.msra.mxu0 %v1601
        %1803 = vmatpush.msra.mxu0 %v1597
        %1804 = vmatpush.msra.mxu0 %v1593
        %1805 = vmatmul.f32.gmra.mxu0 %v1584
        %v1806 = vpop.f32.mrf.mxu0
        %v1807 = vadd.f32 %v1724, %v1806
        %1808 = vmatmul.f32.gmra.mxu0 %v1586
        %v1809 = vpop.f32.mrf.mxu0
        %v1810 = vadd.f32 %v1724, %v1809
        %1811 = vmatmul.f32.gmra.mxu0 %v1588
        %v1812 = vpop.f32.mrf.mxu0
        %v1813 = vadd.f32 %v1724, %v1812
        %1814 = vmatmul.f32.gmra.mxu0 %v1590
        %v1815 = vpop.f32.mrf.mxu0
        %v1816 = vadd.f32 %v1724, %v1815
        %1817 = vdwg.mxu0
        %1818 = vmatpush.msra.mxu0 %v1717
        %1819 = vmatpush.msra.mxu0 %v1713
        %1820 = vmatpush.msra.mxu0 %v1709
        %1821 = vmatpush.msra.mxu0 %v1705
        %1822 = vmatpush.msra.mxu0 %v1701
        %1823 = vmatpush.msra.mxu0 %v1697
        %1824 = vmatpush.msra.mxu0 %v1693
        %1825 = vmatpush.msra.mxu0 %v1689
        %1826 = vmatpush.msra.mxu0 %v1685
        %1827 = vmatpush.msra.mxu0 %v1681
        %1828 = vmatpush.msra.mxu0 %v1677
        %1829 = vmatpush.msra.mxu0 %v1673
        %1830 = vmatpush.msra.mxu0 %v1669
        %1831 = vmatpush.msra.mxu0 %v1665
        %1832 = vmatpush.msra.mxu0 %v1661
        %1833 = vmatpush.msra.mxu0 %v1657
        %1834 = vmatmul.f32.gmra.mxu0 %v1585
        %v1835 = vpop.f32.mrf.mxu0
        %v1836 = vadd.f32 %v1807, %v1835
        %1837 = vmatmul.f32.gmra.mxu0 %v1587
        %v1838 = vpop.f32.mrf.mxu0
        %v1839 = vadd.f32 %v1810, %v1838
        %1840 = vmatmul.f32.gmra.mxu0 %v1589
        %v1841 = vpop.f32.mrf.mxu0
        %v1842 = vadd.f32 %v1813, %v1841
        %1843 = vmatmul.f32.gmra.mxu0 %v1591
        %v1844 = vpop.f32.mrf.mxu0
        %v1845 = vadd.f32 %v1816, %v1844
        %1846 = vdwg.mxu0
        %1847 = vmatpush.msra.mxu0 %v1654
        %1848 = vmatpush.msra.mxu0 %v1650
        %1849 = vmatpush.msra.mxu0 %v1646
        %1850 = vmatpush.msra.mxu0 %v1642
        %1851 = vmatpush.msra.mxu0 %v1638
        %1852 = vmatpush.msra.mxu0 %v1634
        %1853 = vmatpush.msra.mxu0 %v1630
        %1854 = vmatpush.msra.mxu0 %v1626
        %1855 = vmatpush.msra.mxu0 %v1622
        %1856 = vmatpush.msra.mxu0 %v1618
        %1857 = vmatpush.msra.mxu0 %v1614
        %1858 = vmatpush.msra.mxu0 %v1610
        %1859 = vmatpush.msra.mxu0 %v1606
        %1860 = vmatpush.msra.mxu0 %v1602
        %1861 = vmatpush.msra.mxu0 %v1598
        %1862 = vmatpush.msra.mxu0 %v1594
        %1863 = vmatmul.f32.gmra.mxu0 %v1584
        %v1864 = vpop.f32.mrf.mxu0
        %v1865 = vadd.f32 %v1725, %v1864
        %1866 = vmatmul.f32.gmra.mxu0 %v1586
        %v1867 = vpop.f32.mrf.mxu0
        %v1868 = vadd.f32 %v1725, %v1867
        %1869 = vmatmul.f32.gmra.mxu0 %v1588
        %v1870 = vpop.f32.mrf.mxu0
        %v1871 = vadd.f32 %v1725, %v1870
        %1872 = vmatmul.f32.gmra.mxu0 %v1590
        %v1873 = vpop.f32.mrf.mxu0
        %v1874 = vadd.f32 %v1725, %v1873
        %1875 = vdwg.mxu0
        %1876 = vmatpush.msra.mxu0 %v1718
        %1877 = vmatpush.msra.mxu0 %v1714
        %1878 = vmatpush.msra.mxu0 %v1710
        %1879 = vmatpush.msra.mxu0 %v1706
        %1880 = vmatpush.msra.mxu0 %v1702
        %1881 = vmatpush.msra.mxu0 %v1698
        %1882 = vmatpush.msra.mxu0 %v1694
        %1883 = vmatpush.msra.mxu0 %v1690
        %1884 = vmatpush.msra.mxu0 %v1686
        %1885 = vmatpush.msra.mxu0 %v1682
        %1886 = vmatpush.msra.mxu0 %v1678
        %1887 = vmatpush.msra.mxu0 %v1674
        %1888 = vmatpush.msra.mxu0 %v1670
        %1889 = vmatpush.msra.mxu0 %v1666
        %1890 = vmatpush.msra.mxu0 %v1662
        %1891 = vmatpush.msra.mxu0 %v1658
        %1892 = vmatmul.f32.gmra.mxu0 %v1585
        %v1893 = vpop.f32.mrf.mxu0
        %v1894 = vadd.f32 %v1865, %v1893
        %1895 = vmatmul.f32.gmra.mxu0 %v1587
        %v1896 = vpop.f32.mrf.mxu0
        %v1897 = vadd.f32 %v1868, %v1896
        %1898 = vmatmul.f32.gmra.mxu0 %v1589
        %v1899 = vpop.f32.mrf.mxu0
        %v1900 = vadd.f32 %v1871, %v1899
        %1901 = vmatmul.f32.gmra.mxu0 %v1591
        %v1902 = vpop.f32.mrf.mxu0
        %v1903 = vadd.f32 %v1874, %v1902
        %1904 = vdwg.mxu0
        %1905 = vmatpush.msra.mxu0 %v1655
        %1906 = vmatpush.msra.mxu0 %v1651
        %1907 = vmatpush.msra.mxu0 %v1647
        %1908 = vmatpush.msra.mxu0 %v1643
        %1909 = vmatpush.msra.mxu0 %v1639
        %1910 = vmatpush.msra.mxu0 %v1635
        %1911 = vmatpush.msra.mxu0 %v1631
        %1912 = vmatpush.msra.mxu0 %v1627
        %1913 = vmatpush.msra.mxu0 %v1623
        %1914 = vmatpush.msra.mxu0 %v1619
        %1915 = vmatpush.msra.mxu0 %v1615
        %1916 = vmatpush.msra.mxu0 %v1611
        %1917 = vmatpush.msra.mxu0 %v1607
        %1918 = vmatpush.msra.mxu0 %v1603
        %1919 = vmatpush.msra.mxu0 %v1599
        %1920 = vmatpush.msra.mxu0 %v1595
        %1921 = vmatmul.f32.gmra.mxu0 %v1584
        %v1922 = vpop.f32.mrf.mxu0
        %v1923 = vadd.f32 %v1726, %v1922
        %1924 = vmatmul.f32.gmra.mxu0 %v1586
        %v1925 = vpop.f32.mrf.mxu0
        %v1926 = vadd.f32 %v1726, %v1925
        %1927 = vmatmul.f32.gmra.mxu0 %v1588
        %v1928 = vpop.f32.mrf.mxu0
        %v1929 = vadd.f32 %v1726, %v1928
        %1930 = vmatmul.f32.gmra.mxu0 %v1590
        %v1931 = vpop.f32.mrf.mxu0
        %v1932 = vadd.f32 %v1726, %v1931
        %1933 = vdwg.mxu0
        %1934 = vmatpush.msra.mxu0 %v1719
        %1935 = vmatpush.msra.mxu0 %v1715
        %1936 = vmatpush.msra.mxu0 %v1711
        %1937 = vmatpush.msra.mxu0 %v1707
        %1938 = vmatpush.msra.mxu0 %v1703
        %1939 = vmatpush.msra.mxu0 %v1699
        %1940 = vmatpush.msra.mxu0 %v1695
        %1941 = vmatpush.msra.mxu0 %v1691
        %1942 = vmatpush.msra.mxu0 %v1687
        %1943 = vmatpush.msra.mxu0 %v1683
        %1944 = vmatpush.msra.mxu0 %v1679
        %1945 = vmatpush.msra.mxu0 %v1675
        %1946 = vmatpush.msra.mxu0 %v1671
        %1947 = vmatpush.msra.mxu0 %v1667
        %1948 = vmatpush.msra.mxu0 %v1663
        %1949 = vmatpush.msra.mxu0 %v1659
        %1950 = vmatmul.f32.gmra.mxu0 %v1585
        %v1951 = vpop.f32.mrf.mxu0
        %v1952 = vadd.f32 %v1923, %v1951
        %1953 = vmatmul.f32.gmra.mxu0 %v1587
        %v1954 = vpop.f32.mrf.mxu0
        %v1955 = vadd.f32 %v1926, %v1954
        %1956 = vmatmul.f32.gmra.mxu0 %v1589
        %v1957 = vpop.f32.mrf.mxu0
        %v1958 = vadd.f32 %v1929, %v1957
        %1959 = vmatmul.f32.gmra.mxu0 %v1591
        %v1960 = vpop.f32.mrf.mxu0
        %v1961 = vadd.f32 %v1932, %v1960
        %1962 = vdwg.mxu0
        %v1963 = vmax.f32 %v1778, 0.0
        %v1964 = vmax.f32 %v1836, 0.0
        %v1965 = vmax.f32 %v1894, 0.0
        %v1966 = vmax.f32 %v1952, 0.0
        %v1967 = vmax.f32 %v1781, 0.0
        %v1968 = vmax.f32 %v1839, 0.0
        %v1969 = vmax.f32 %v1897, 0.0
        %v1970 = vmax.f32 %v1955, 0.0
        %v1971 = vmax.f32 %v1784, 0.0
        %v1972 = vmax.f32 %v1842, 0.0
        %v1973 = vmax.f32 %v1900, 0.0
        %v1974 = vmax.f32 %v1958, 0.0
        %v1975 = vmax.f32 %v1787, 0.0
        %v1976 = vmax.f32 %v1845, 0.0
        %v1977 = vmax.f32 %v1903, 0.0
        %v1978 = vmax.f32 %v1961, 0.0
        %v1979 = vld [vmem:[%s12] sm:$0xff]
        %v1980 = vld [vmem:[%s12 + $0x8] sm:$0xff]
        %v1981 = vld [vmem:[%s12 + $0x10] sm:$0xff]
        %v1982 = vld [vmem:[%s12 + $0x18] sm:$0xff]
        %v1983 = vld [vmem:[%s12 + $0x20] sm:$0xff]
        %v1984 = vld [vmem:[%s12 + $0x28] sm:$0xff]
        %v1985 = vld [vmem:[%s12 + $0x30] sm:$0xff]
        %v1986 = vld [vmem:[%s12 + $0x38] sm:$0xff]
        %v1987 = vld [vmem:[%s12 + $0x40] sm:$0xff]
        %v1988 = vld [vmem:[%s12 + $0x48] sm:$0xff]
        %v1989 = vld [vmem:[%s12 + $0x50] sm:$0xff]
        %v1990 = vld [vmem:[%s12 + $0x58] sm:$0xff]
        %v1991 = vld [vmem:[%s12 + $0x60] sm:$0xff]
        %v1992 = vld [vmem:[%s12 + $0x68] sm:$0xff]
        %v1993 = vld [vmem:[%s12 + $0x70] sm:$0xff]
        %v1994 = vld [vmem:[%s12 + $0x78] sm:$0xff]
        %v1995 = vld [vmem:[%s12 + $0x80] sm:$0xff]
        %v1996 = vld [vmem:[%s12 + $0x88] sm:$0xff]
        %v1997 = vld [vmem:[%s12 + $0x90] sm:$0xff]
        %v1998 = vld [vmem:[%s12 + $0x98] sm:$0xff]
        %v1999 = vld [vmem:[%s12 + $0xa0] sm:$0xff]
        %v2000 = vld [vmem:[%s12 + $0xa8] sm:$0xff]
        %v2001 = vld [vmem:[%s12 + $0xb0] sm:$0xff]
        %v2002 = vld [vmem:[%s12 + $0xb8] sm:$0xff]
        %v2003 = vld [vmem:[%s12 + $0xc0] sm:$0xff]
        %v2004 = vld [vmem:[%s12 + $0xc8] sm:$0xff]
        %v2005 = vld [vmem:[%s12 + $0xd0] sm:$0xff]
        %v2006 = vld [vmem:[%s12 + $0xd8] sm:$0xff]
        %v2007 = vld [vmem:[%s12 + $0xe0] sm:$0xff]
        %v2008 = vld [vmem:[%s12 + $0xe8] sm:$0xff]
        %v2009 = vld [vmem:[%s12 + $0xf0] sm:$0xff]
        %v2010 = vld [vmem:[%s12 + $0xf8] sm:$0xff]
        %v2011 = vld [vmem:[%s12 + $0x100] sm:$0xff]
        %v2012 = vld [vmem:[%s12 + $0x108] sm:$0xff]
        %v2013 = vld [vmem:[%s12 + $0x110] sm:$0xff]
        %v2014 = vld [vmem:[%s12 + $0x118] sm:$0xff]
        %v2015 = vld [vmem:[%s12 + $0x120] sm:$0xff]
        %v2016 = vld [vmem:[%s12 + $0x128] sm:$0xff]
        %v2017 = vld [vmem:[%s12 + $0x130] sm:$0xff]
        %v2018 = vld [vmem:[%s12 + $0x138] sm:$0xff]
        %v2019 = vld [vmem:[%s12 + $0x140] sm:$0xff]
        %v2020 = vld [vmem:[%s12 + $0x148] sm:$0xff]
        %v2021 = vld [vmem:[%s12 + $0x150] sm:$0xff]
        %v2022 = vld [vmem:[%s12 + $0x158] sm:$0xff]
        %v2023 = vld [vmem:[%s12 + $0x160] sm:$0xff]
        %v2024 = vld [vmem:[%s12 + $0x168] sm:$0xff]
        %v2025 = vld [vmem:[%s12 + $0x170] sm:$0xff]
        %v2026 = vld [vmem:[%s12 + $0x178] sm:$0xff]
        %v2027 = vld [vmem:[%s12 + $0x180] sm:$0xff]
        %v2028 = vld [vmem:[%s12 + $0x188] sm:$0xff]
        %v2029 = vld [vmem:[%s12 + $0x190] sm:$0xff]
        %v2030 = vld [vmem:[%s12 + $0x198] sm:$0xff]
        %v2031 = vld [vmem:[%s12 + $0x1a0] sm:$0xff]
        %v2032 = vld [vmem:[%s12 + $0x1a8] sm:$0xff]
        %v2033 = vld [vmem:[%s12 + $0x1b0] sm:$0xff]
        %v2034 = vld [vmem:[%s12 + $0x1b8] sm:$0xff]
        %v2035 = vld [vmem:[%s12 + $0x1c0] sm:$0xff]
        %v2036 = vld [vmem:[%s12 + $0x1c8] sm:$0xff]
        %v2037 = vld [vmem:[%s12 + $0x1d0] sm:$0xff]
        %v2038 = vld [vmem:[%s12 + $0x1d8] sm:$0xff]
        %v2039 = vld [vmem:[%s12 + $0x1e0] sm:$0xff]
        %v2040 = vld [vmem:[%s12 + $0x1e8] sm:$0xff]
        %v2041 = vld [vmem:[%s12 + $0x1f0] sm:$0xff]
        %v2042 = vld [vmem:[%s12 + $0x1f8] sm:$0xff]
        %v2043 = vld [vmem:[%s13 + $0x23] ss:$0 sm:$0xff]
        %2044 = vmatpush.msra.mxu0 %v1994
        %2045 = vmatpush.msra.mxu0 %v1993
        %2046 = vmatpush.msra.mxu0 %v1992
        %2047 = vmatpush.msra.mxu0 %v1991
        %2048 = vmatpush.msra.mxu0 %v1990
        %2049 = vmatpush.msra.mxu0 %v1989
        %2050 = vmatpush.msra.mxu0 %v1988
        %2051 = vmatpush.msra.mxu0 %v1987
        %2052 = vmatpush.msra.mxu0 %v1986
        %2053 = vmatpush.msra.mxu0 %v1985
        %2054 = vmatpush.msra.mxu0 %v1984
        %2055 = vmatpush.msra.mxu0 %v1983
        %2056 = vmatpush.msra.mxu0 %v1982
        %2057 = vmatpush.msra.mxu0 %v1981
        %2058 = vmatpush.msra.mxu0 %v1980
        %2059 = vmatpush.msra.mxu0 %v1979
        %2060 = vmatmul.f32.gmra.mxu0 %v1963
        %v2061 = vpop.f32.mrf.mxu0
        %v2062 = vadd.f32 %v2043, %v2061
        %2063 = vmatmul.f32.gmra.mxu0 %v1967
        %v2064 = vpop.f32.mrf.mxu0
        %v2065 = vadd.f32 %v2043, %v2064
        %2066 = vmatmul.f32.gmra.mxu0 %v1971
        %v2067 = vpop.f32.mrf.mxu0
        %v2068 = vadd.f32 %v2043, %v2067
        %2069 = vmatmul.f32.gmra.mxu0 %v1975
        %v2070 = vpop.f32.mrf.mxu0
        %v2071 = vadd.f32 %v2043, %v2070
        %2072 = vdwg.mxu0
        %2073 = vmatpush.msra.mxu0 %v2010
        %2074 = vmatpush.msra.mxu0 %v2009
        %2075 = vmatpush.msra.mxu0 %v2008
        %2076 = vmatpush.msra.mxu0 %v2007
        %2077 = vmatpush.msra.mxu0 %v2006
        %2078 = vmatpush.msra.mxu0 %v2005
        %2079 = vmatpush.msra.mxu0 %v2004
        %2080 = vmatpush.msra.mxu0 %v2003
        %2081 = vmatpush.msra.mxu0 %v2002
        %2082 = vmatpush.msra.mxu0 %v2001
        %2083 = vmatpush.msra.mxu0 %v2000
        %2084 = vmatpush.msra.mxu0 %v1999
        %2085 = vmatpush.msra.mxu0 %v1998
        %2086 = vmatpush.msra.mxu0 %v1997
        %2087 = vmatpush.msra.mxu0 %v1996
        %2088 = vmatpush.msra.mxu0 %v1995
        %2089 = vmatmul.f32.gmra.mxu0 %v1964
        %v2090 = vpop.f32.mrf.mxu0
        %v2091 = vadd.f32 %v2062, %v2090
        %2092 = vmatmul.f32.gmra.mxu0 %v1968
        %v2093 = vpop.f32.mrf.mxu0
        %v2094 = vadd.f32 %v2065, %v2093
        %2095 = vmatmul.f32.gmra.mxu0 %v1972
        %v2096 = vpop.f32.mrf.mxu0
        %v2097 = vadd.f32 %v2068, %v2096
        %2098 = vmatmul.f32.gmra.mxu0 %v1976
        %v2099 = vpop.f32.mrf.mxu0
        %v2100 = vadd.f32 %v2071, %v2099
        %2101 = vdwg.mxu0
        %2102 = vmatpush.msra.mxu0 %v2026
        %2103 = vmatpush.msra.mxu0 %v2025
        %2104 = vmatpush.msra.mxu0 %v2024
        %2105 = vmatpush.msra.mxu0 %v2023
        %2106 = vmatpush.msra.mxu0 %v2022
        %2107 = vmatpush.msra.mxu0 %v2021
        %2108 = vmatpush.msra.mxu0 %v2020
        %2109 = vmatpush.msra.mxu0 %v2019
        %2110 = vmatpush.msra.mxu0 %v2018
        %2111 = vmatpush.msra.mxu0 %v2017
        %2112 = vmatpush.msra.mxu0 %v2016
        %2113 = vmatpush.msra.mxu0 %v2015
        %2114 = vmatpush.msra.mxu0 %v2014
        %2115 = vmatpush.msra.mxu0 %v2013
        %2116 = vmatpush.msra.mxu0 %v2012
        %2117 = vmatpush.msra.mxu0 %v2011
        %2118 = vmatmul.f32.gmra.mxu0 %v1965
        %v2119 = vpop.f32.mrf.mxu0
        %v2120 = vadd.f32 %v2091, %v2119
        %2121 = vmatmul.f32.gmra.mxu0 %v1969
        %v2122 = vpop.f32.mrf.mxu0
        %v2123 = vadd.f32 %v2094, %v2122
        %2124 = vmatmul.f32.gmra.mxu0 %v1973
        %v2125 = vpop.f32.mrf.mxu0
        %v2126 = vadd.f32 %v2097, %v2125
        %2127 = vmatmul.f32.gmra.mxu0 %v1977
        %v2128 = vpop.f32.mrf.mxu0
        %v2129 = vadd.f32 %v2100, %v2128
        %2130 = vdwg.mxu0
        %2131 = vmatpush.msra.mxu0 %v2042
        %2132 = vmatpush.msra.mxu0 %v2041
        %2133 = vmatpush.msra.mxu0 %v2040
        %2134 = vmatpush.msra.mxu0 %v2039
        %2135 = vmatpush.msra.mxu0 %v2038
        %2136 = vmatpush.msra.mxu0 %v2037
        %2137 = vmatpush.msra.mxu0 %v2036
        %2138 = vmatpush.msra.mxu0 %v2035
        %2139 = vmatpush.msra.mxu0 %v2034
        %2140 = vmatpush.msra.mxu0 %v2033
        %2141 = vmatpush.msra.mxu0 %v2032
        %2142 = vmatpush.msra.mxu0 %v2031
        %2143 = vmatpush.msra.mxu0 %v2030
        %2144 = vmatpush.msra.mxu0 %v2029
        %2145 = vmatpush.msra.mxu0 %v2028
        %2146 = vmatpush.msra.mxu0 %v2027
        %2147 = vmatmul.f32.gmra.mxu0 %v1966
        %v2148 = vpop.f32.mrf.mxu0
        %v2149 = vadd.f32 %v2120, %v2148
        %2150 = vmatmul.f32.gmra.mxu0 %v1970
        %v2151 = vpop.f32.mrf.mxu0
        %v2152 = vadd.f32 %v2123, %v2151
        %2153 = vmatmul.f32.gmra.mxu0 %v1974
        %v2154 = vpop.f32.mrf.mxu0
        %v2155 = vadd.f32 %v2126, %v2154
        %2156 = vmatmul.f32.gmra.mxu0 %v1978
        %v2157 = vpop.f32.mrf.mxu0
        %v2158 = vadd.f32 %v2129, %v2157
        %2159 = vdwg.mxu0
        %v2160 = vtanh.pop %v2149
        %v2161 = vtanh.pop %v2152
        %v2162 = vtanh.pop %v2155
        %v2163 = vtanh.pop %v2158
        %2164 = vst.msk [vmem:[%s538] sm:$0xff] %vm568, %v2160
        %2165 = vst.msk [vmem:[%s538 + $0x8] sm:$0xff] %vm568, %v2161
        %2166 = vst.msk [vmem:[%s538 + $0x10] sm:$0xff] %vm568, %v2162
        %2167 = vst.msk [vmem:[%s538 + $0x18] sm:$0xff] %vm568, %v2163
        %v2168 = vld [vmem:[%s13 + $0x24] ss:$0 sm:$0xff]
        %v2169 = vld [vmem:[%s13 + $0x25] ss:$0 sm:$0xff]
        %v2170 = vmul.f32 %v2160, %v2168
        %v2171 = vmul.f32 %v2161, %v2168
        %v2172 = vmul.f32 %v2162, %v2168
        %v2173 = vmul.f32 %v2163, %v2168
        %v2174 = vsel %vm568, %v2170, 0.0
        %2175 = vadd.xlane.f32.xlu0 %v2174
        %v2176 = vpop.xlane.xlu0 %2175
        %v2177 = vsel %vm568, %v2171, 0.0
        %2178 = vadd.xlane.f32.xlu0 %v2177
        %v2179 = vpop.xlane.xlu0 %2178
        %v2180 = vsel %vm568, %v2172, 0.0
        %2181 = vadd.xlane.f32.xlu0 %v2180
        %v2182 = vpop.xlane.xlu0 %2181
        %v2183 = vsel %vm568, %v2173, 0.0
        %2184 = vadd.xlane.f32.xlu0 %v2183
        %v2185 = vpop.xlane.xlu0 %2184
        %v2186 = vadd.f32 %v2176, %v2169
        %v2187 = vadd.f32 %v2179, %v2169
        %v2188 = vadd.f32 %v2182, %v2169
        %v2189 = vadd.f32 %v2185, %v2169
        %vm2190 = vcmask 7168
        %2191 = vst.msk [vmem:[%s544] sm:$0xff] %vm2190, %v2186
        %2192 = vst.msk [vmem:[%s544 + $0x8] sm:$0xff] %vm2190, %v2187
        %2193 = vst.msk [vmem:[%s544 + $0x10] sm:$0xff] %vm2190, %v2188
        %2194 = vst.msk [vmem:[%s544 + $0x18] sm:$0xff] %vm2190, %v2189
        %s2195 = smul.u32 4, %s29
        %p2196 = scmp.lt.s32.totalorder %s2195, 11
        %s2197 = scalar_select %p2196, %s2195, 11
        %s2198 = smul.addr %s2197, 8
        %s2199 = scalar_lea.vmem %s14, %s2198
        %s2200 = smul.u32 4, %s29
        %p2201 = scmp.lt.s32.totalorder %s2200, 11
        %s2202 = scalar_select %p2201, %s2200, 11
        %s2203 = smul.addr %s2202, 8
        %s2204 = scalar_lea.vmem %s15, %s2203
        // Predicated region
        $region85: #{tpu_custom_call.1} parent=75 // pred_check
          %p2205 = pneg %p346
        $region86: #{tpu_custom_call.1} parent=75 // pred_check_branch
          %2207 = sbr.rel (%p2205) target = $region88
        $region87: #{tpu_custom_call.1} parent=75 // pred_region
          %s2208 = smul.u32 4, %s29
        $region88: #{tpu_custom_call.1} parent=75 // pred_fallthru
          _
        // Predicated region
        $region89: #{tpu_custom_call.1} parent=75 // pred_check
          %p2209 = pneg %p372
        $region90: #{tpu_custom_call.1} parent=75 // pred_check_branch
          %2211 = sbr.rel (%p2209) target = $region92
        $region91: #{tpu_custom_call.1} parent=75 // pred_region
          %s2212 = smul.u32 4, %s29
        $region92: #{tpu_custom_call.1} parent=75 // pred_fallthru
          _
      $region76: #{tpu_custom_call.1} parent=5 // pred_fallthru
        _
      %p2213 = scmp.le.s32.totalorder 2, %s24
      // Predicated region
      $region93: #{tpu_custom_call.1} parent=5 // pred_check
        %p2214 = pneg %p2213
      $region94: #{tpu_custom_call.1} parent=5 // pred_check_branch
        %2216 = sbr.rel (%p2214) target = $region96
      $region95: #{tpu_custom_call.1} parent=5 // pred_region
        %s2217 = ssub.s32 %s24, 2
        // Predicated region
        $region97: #{tpu_custom_call.1} parent=95 // pred_check
          %p2218 = pneg %p352
        $region98: #{tpu_custom_call.1} parent=95 // pred_check_branch
          %2220 = sbr.rel (%p2218) target = $region100
        $region99: #{tpu_custom_call.1} parent=95 // pred_region
          %s2221 = smul.u32 4, %s30
          %p2222 = scmp.lt.s32.totalorder %s2221, 11
          %s2223 = scalar_select %p2222, %s2221, 11
          %s2224 = smul.addr %s2223, 8
          %s2225 = scalar_lea.vmem %s14, %s2224
        $region100: #{tpu_custom_call.1} parent=95 // pred_fallthru
          _
        // Predicated region
        $region101: #{tpu_custom_call.1} parent=95 // pred_check
          %p2226 = pneg %p378
        $region102: #{tpu_custom_call.1} parent=95 // pred_check_branch
          %2228 = sbr.rel (%p2226) target = $region104
        $region103: #{tpu_custom_call.1} parent=95 // pred_region
          %s2229 = smul.u32 4, %s30
          %p2230 = scmp.lt.s32.totalorder %s2229, 11
          %s2231 = scalar_select %p2230, %s2229, 11
          %s2232 = smul.addr %s2231, 8
          %s2233 = scalar_lea.vmem %s15, %s2232
        $region104: #{tpu_custom_call.1} parent=95 // pred_fallthru
          _
      $region96: #{tpu_custom_call.1} parent=5 // pred_fallthru
        _
    $region6: #{tpu_custom_call.1} parent=1 // loop_footer
      %s28 = sadd.s32 1, %s24
    $region7: #{tpu_custom_call.1} parent=1 // loop_footer_branch
      %23 = sbr.rel target = $region3
    $region8: #{tpu_custom_call.1} parent=1 // loop_exit
      _
    %2234 = vsyncpa [#allocation3], 1
    %s2235 = scalar_lea.sflag [#allocation3], 1
    %2236 = vsyncpa %s2235, 1
    %2237 = vsyncpa [#allocation5], 1

</llo_original>
